<compile_context>
chip_gen: v6e
topology: v6e:2x2x1
jax: 0.10.0
libtpu: 0.0.40
codegen_flags: <defaults>
</compile_context>

<pallas_src>
import functools

import jax
import jax.numpy as jnp
import numpy as np
from jax.experimental import pallas as pl
from jax.experimental.pallas import tpu as pltpu


# ----------------------------------------------------------------------------
# Kernel: one (batch, time-tile) grid point = conv1 + relu + conv2 + relu +
# residual(+1x1 conv) + relu, all fused.
# ----------------------------------------------------------------------------
def _temporal_block_kernel(x_ref, w1_ref, b1_ref, w2_ref, b2_ref, *rest,
                           K, dilation, padding, pad_h, tile_t, nt,
                           has_downsample, fuse1, fuse2, compute_dtype):
    if has_downsample:
        wd_ref, bd_ref, out_ref, xbuf, o1buf = rest
    else:
        out_ref, xbuf, o1buf = rest

    t_idx = pl.program_id(1)
    off = pad_h - padding  # start of the causal-history window in the buffers

    # Zero ONLY the `padding`-wide causal history at the start of a sequence.
    # NOTE: together with the carry at the bottom this requires the time axis
    # to be the innermost, in-order ("arbitrary") grid axis.
    if padding > 0:
        @pl.when(t_idx == 0)
        def _():
            xbuf[:, off:pad_h] = jnp.zeros((xbuf.shape[0], padding), xbuf.dtype)
            o1buf[:, off:pad_h] = jnp.zeros((o1buf.shape[0], padding),
                                            o1buf.dtype)

    # Stage the current input tile at a 128-aligned (lane-dense) offset.
    x_tile = x_ref[...]                                   # (Cin, tile_t)
    x_comp = x_tile.astype(compute_dtype)
    if padding > 0:
        xbuf[:, pad_h:] = x_comp

    def dilated_conv(w_ref, b_ref, buf, last_tap, fuse):
        """Causal dilated conv over `buf`; tap K-1 comes from registers."""
        if fuse:
            # Tiny channels: one MXU dot against the (Cout, K*C) flat weight.
            cols = [buf[:, off + k * dilation: off + k * dilation + tile_t]
                    for k in range(K - 1)] + [last_tap]
            im = cols[0] if K == 1 else jnp.concatenate(cols, axis=0)
            acc = jnp.dot(w_ref[...], im, preferred_element_type=jnp.float32)
        else:
            # Large channels: K accumulated dots against the (K, Cout, C)
            # per-tap weights -- no materialized im2col, no extra VMEM copies.
            acc = jnp.dot(w_ref[K - 1], last_tap,
                          preferred_element_type=jnp.float32)
            for k in range(K - 1):
                acc = acc + jnp.dot(
                    w_ref[k],
                    buf[:, off + k * dilation: off + k * dilation + tile_t],
                    preferred_element_type=jnp.float32)
        return jnp.maximum(acc + b_ref[...], 0.0)         # (Cout, tile_t) f32

    # ---- conv1 (dilated, causal) --------------------------------------------
    out1 = dilated_conv(w1_ref, b1_ref, xbuf, x_comp, fuse1)
    o1_comp = out1.astype(compute_dtype)
    if padding > 0:
        o1buf[:, pad_h:] = o1_comp

    # ---- conv2 (dilated, causal) --------------------------------------------
    out2 = dilated_conv(w2_ref, b2_ref, o1buf, o1_comp, fuse2)

    # ---- residual (1x1 conv when channel counts differ) + final ReLU --------
    if has_downsample:
        res = jnp.dot(wd_ref[...], x_comp,
                      preferred_element_type=jnp.float32) + bd_ref[...]
    else:
        res = x_tile.astype(jnp.float32)
    out_ref[...] = jnp.maximum(out2 + res, 0.0).astype(out_ref.dtype)

    # ---- carry the last `padding` columns as next tile's causal history -----
    if nt > 1 and padding > 0:
        xbuf[:, off:pad_h] = x_comp[:, tile_t - padding:]
        o1buf[:, off:pad_h] = o1_comp[:, tile_t - padding:]


# ----------------------------------------------------------------------------
# Wrapper helpers.
# ----------------------------------------------------------------------------
def weight_norm_weight(v, g):
    # PyTorch weight_norm default (dim=0): w = g * v / ||v||  per out-channel
    norm = jnp.sqrt(jnp.sum(v * v, axis=(1, 2), keepdims=True))
    return g[:, None, None] * v / norm


def _chip_profile():
    """Returns (default compute dtype, tile VMEM budget, vmem_limit cap, tile cap)."""
    kind = ""
    try:
        kind = jax.devices()[0].device_kind.lower()
    except Exception:
        pass
    if "v6" in kind:                       # 128 MiB VMEM, bf16 MXU/VPU
        return jnp.bfloat16, 40 << 20, 100 << 20, 2048
    if "v7" in kind or "7x" in kind:       # 64 MiB VMEM per TC
        return jnp.bfloat16, 20 << 20, 56 << 20, 1024
    if "v5" in kind:                       # 16 MiB scoped default, no bf16 VPU
        return jnp.float32, 10 << 20, 100 << 20, 512
    return jnp.float32, 16 << 20, None, 1024


def _auto_tile_t(Cin, Cout, K, pad_h, cbytes, obytes, fuse1, fuse2,
                 budget, tile_cap):
    fixed = 2 * (Cout * K * Cin + Cout * K * Cout + Cout * Cin) * cbytes
    fixed += (Cin + Cout) * pad_h * cbytes + (1 << 20)
    per_col = (2 * Cin * 4 + 2 * Cout * obytes        # pipelined in/out blocks
               + (Cin + Cout) * cbytes                # history scratches
               + 6 * Cout * 4 + Cin * cbytes)         # live f32 intermediates
    if fuse1:
        per_col += 2 * K * Cin * cbytes
    if fuse2:
        per_col += 2 * K * Cout * cbytes
    tile = (budget - fixed) // max(per_col, 1)
    tile = max(128, (tile // 128) * 128)
    return int(min(tile, tile_cap))


def _vmem_bytes_estimate(Cin, Cout, K, tile_t, pad_h, cbytes, obytes,
                         fuse1, fuse2, has_downsample):
    est = 2 * Cin * tile_t * 4 + 2 * Cout * tile_t * obytes
    est += 2 * (Cout * K * Cin + Cout * K * Cout
                + (Cout * Cin if has_downsample else 0) + 4 * Cout) * cbytes
    est += (Cin + Cout) * (pad_h + tile_t) * cbytes
    est += 6 * Cout * tile_t * 4 + Cin * tile_t * cbytes
    if fuse1:
        est += 2 * K * Cin * tile_t * cbytes
    if fuse2:
        est += 2 * K * Cout * tile_t * cbytes
    return est


# ----------------------------------------------------------------------------
# Forward entry point.
# ----------------------------------------------------------------------------
def temporal_block_forward(x, params, *, kernel_size, stride, dilation,
                           padding, compute_dtype=None, out_dtype=None,
                           max_tile_t=None, fuse_threshold=256):
    assert stride == 1, "TCN TemporalBlock is used with stride=1"
    assert padding == dilation * (kernel_size - 1), \
        "residual add requires padding == dilation*(kernel_size-1)"

    B, Cin, T = x.shape
    K = kernel_size
    w1 = weight_norm_weight(params["v1"], params["g1"])    # (Cout, Cin, K)
    w2 = weight_norm_weight(params["v2"], params["g2"])    # (Cout, Cout, K)
    Cout = w1.shape[0]
    has_downsample = Cin != Cout

    prof_dtype, tile_budget, vmem_cap, tile_cap = _chip_profile()
    if compute_dtype is None:
        compute_dtype = prof_dtype
    if out_dtype is None:
        out_dtype = x.dtype
    cbytes = jnp.dtype(compute_dtype).itemsize
    obytes = jnp.dtype(out_dtype).itemsize

    # Per-conv choice: fused single dot only for tiny contraction depths.
    fuse1 = K * Cin <= fuse_threshold
    fuse2 = K * Cout <= fuse_threshold

    pad_h = 0 if padding == 0 else ((padding + 127) // 128) * 128

    # ---- time tiling ---------------------------------------------------------
    if max_tile_t is None:
        max_tile_t = _auto_tile_t(Cin, Cout, K, pad_h, cbytes, obytes,
                                  fuse1, fuse2, tile_budget, tile_cap)
    if T <= max_tile_t:
        tile_t, nt, t_pad = T, 1, T
    else:
        tile_t = max_tile_t
        assert tile_t % 128 == 0, "time tile must be a multiple of 128"
        nt = -(-T // tile_t)
        t_pad = nt * tile_t
        assert padding <= tile_t, "causal history must fit within one tile"

    x_in = x if t_pad == T else jnp.pad(x, ((0, 0), (0, 0), (0, t_pad - T)))

    # ---- weight layout -------------------------------------------------------
    # fused : w_flat[o, k*C + c] = w[o, c, k]  (matches the im2col row order)
    # per-tap: w3d[k, o, c]      = w[o, c, k]
    def shape_weight(w, fuse):
        if fuse:
            o, c, k = w.shape
            return jnp.transpose(w, (0, 2, 1)).reshape(o, k * c)
        return jnp.transpose(w, (2, 0, 1))

    w1_arr = shape_weight(w1, fuse1).astype(compute_dtype)
    w2_arr = shape_weight(w2, fuse2).astype(compute_dtype)
    b1 = params["b1"][:, None].astype(jnp.float32)          # (Cout, 1)
    b2 = params["b2"][:, None].astype(jnp.float32)

    args = [x_in, w1_arr, b1, w2_arr, b2]
    if has_downsample:
        args += [params["wd"][:, :, 0].astype(compute_dtype),
                 params["bd"][:, None].astype(jnp.float32)]

    # ---- scratch, cost & VMEM budgeting --------------------------------------
    if padding > 0:
        scratch_shapes = [pltpu.VMEM((Cin, pad_h + tile_t), compute_dtype),
                          pltpu.VMEM((Cout, pad_h + tile_t), compute_dtype)]
    else:  # K == 1: no shifted taps, no history; allocate dummies only.
        scratch_shapes = [pltpu.VMEM((8, 128), compute_dtype),
                          pltpu.VMEM((8, 128), compute_dtype)]

    est = _vmem_bytes_estimate(Cin, Cout, K, tile_t, pad_h, cbytes, obytes,
                               fuse1, fuse2, has_downsample)
    if vmem_cap is None:
        vmem_limit = None
    else:
        vmem_limit = int(min(vmem_cap, max(32 << 20, int(est * 1.3) + (2 << 20))))

    flops = 2 * B * t_pad * (Cout * K * Cin + Cout * K * Cout)
    if has_downsample:
        flops += 2 * B * t_pad * Cout * Cin
    wparams = Cout * K * Cin + Cout * K * Cout + (Cout * Cin if has_downsample else 0)
    bytes_acc = (B * Cin * t_pad * 4 + B * Cout * t_pad * obytes
                 + wparams * cbytes + 3 * Cout * 4)
    cost = pl.CostEstimate(flops=int(flops), transcendentals=0,
                           bytes_accessed=int(bytes_acc))

    kernel = functools.partial(
        _temporal_block_kernel,
        K=K, dilation=dilation, padding=padding, pad_h=pad_h,
        tile_t=tile_t, nt=nt, has_downsample=has_downsample,
        fuse1=fuse1, fuse2=fuse2, compute_dtype=compute_dtype)

    def _call(single_buffer_consts):
        def const_spec(shape):
            kw = {}
            if single_buffer_consts:
                kw = dict(pipeline_mode=pl.Buffered(1))
            return pl.BlockSpec(shape, lambda b, t, _n=len(shape): (0,) * _n,
                                **kw)

        in_specs = [pl.BlockSpec((None, Cin, tile_t), lambda b, t: (b, 0, t)),
                    const_spec(w1_arr.shape), const_spec(b1.shape),
                    const_spec(w2_arr.shape), const_spec(b2.shape)]
        if has_downsample:
            in_specs += [const_spec(args[5].shape), const_spec(args[6].shape)]

        cp_kwargs = dict(dimension_semantics=("parallel", "arbitrary"))
        if vmem_limit is not None:
            cp_kwargs["vmem_limit_bytes"] = vmem_limit

        return pl.pallas_call(
            kernel,
            out_shape=jax.ShapeDtypeStruct((B, Cout, t_pad), out_dtype),
            grid=(B, nt),
            in_specs=in_specs,
            out_specs=pl.BlockSpec((None, Cout, tile_t), lambda b, t: (b, 0, t)),
            scratch_shapes=scratch_shapes,
            compiler_params=pltpu.CompilerParams(**cp_kwargs),
            cost_estimate=cost,
        )

    try:
        out = _call(True)(*args)
    except Exception:
        # Fallback: some jax versions may reject single-buffered (Buffered(1))
        # constant operands; default double-buffering is always correct.
        out = _call(False)(*args)

    if t_pad != T:
        out = out[:, :, :T]
    return out


# ----------------------------------------------------------------------------
# Pure-JAX reference (numerical self-check only).
# ----------------------------------------------------------------------------
def temporal_block_reference(x, params, *, kernel_size, stride, dilation,
                             padding):
    w1 = weight_norm_weight(params["v1"], params["g1"])
    w2 = weight_norm_weight(params["v2"], params["g2"])

    def causal_conv(inp, w, b):
        y = jax.lax.conv_general_dilated(
            inp, w, window_strides=(stride,), padding=[(padding, padding)],
            rhs_dilation=(dilation,),
            dimension_numbers=("NCH", "OIH", "NCH"))
        if padding > 0:
            y = y[:, :, :-padding]                           # Chomp1d
        return jnp.maximum(y + b[None, :, None], 0.0)

    out = causal_conv(x, w1, params["b1"])
    out = causal_conv(out, w2, params["b2"])
    if x.shape[1] != w1.shape[0]:
        res = (jnp.einsum("oi,bit->bot", params["wd"][:, :, 0], x)
               + params["bd"][None, :, None])
    else:
        res = x
    return jnp.maximum(out + res, 0.0)


# ----------------------------------------------------------------------------
def _make_params(key, Cin, Cout, K, with_downsample):
    k = jax.random.split(key, 6)
    v1 = 0.01 * jax.random.normal(k[0], (Cout, Cin, K), jnp.float32)
    v2 = 0.01 * jax.random.normal(k[1], (Cout, Cout, K), jnp.float32)
    params = {
        "v1": v1, "g1": jnp.sqrt(jnp.sum(v1 * v1, axis=(1, 2))),
        "b1": 0.1 * jax.random.normal(k[2], (Cout,), jnp.float32),
        "v2": v2, "g2": jnp.sqrt(jnp.sum(v2 * v2, axis=(1, 2))),
        "b2": 0.1 * jax.random.normal(k[3], (Cout,), jnp.float32),
    }
    if with_downsample:
        params["wd"] = 0.01 * jax.random.normal(k[4], (Cout, Cin, 1),
                                                jnp.float32)
        params["bd"] = 0.1 * jax.random.normal(k[5], (Cout,), jnp.float32)
    return params


if __name__ == "__main__":
    key = jax.random.PRNGKey(0)
    kp1, kx1, kp2, kx2, kp4, kx4 = jax.random.split(key, 6)
    stride = 1

    # --- Test 1: tiny shapes, downsample, single time tile, f32 (fused taps) -
    B, Cin, Cout, T = 2, 4, 8, 16
    K, dilation = 3, 2
    padding = (K - 1) * dilation
    params1 = _make_params(kp1, Cin, Cout, K, with_downsample=True)
    x1 = jax.random.normal(kx1, (B, Cin, T), jnp.float32)
    out1 = jax.block_until_ready(temporal_block_forward(
        x1, params1, kernel_size=K, stride=stride, dilation=dilation,
        padding=padding, compute_dtype=jnp.float32))
    ref1 = temporal_block_reference(
        x1, params1, kernel_size=K, stride=stride, dilation=dilation,
        padding=padding)
    np.testing.assert_allclose(np.asarray(out1), np.asarray(ref1),
                               rtol=1e-5, atol=1e-5)

    # --- Test 2: identity residual, multi-tile grid path with history carry --
    B2, C2, T2 = 2, 8, 400
    K2, dilation2 = 3, 4
    padding2 = (K2 - 1) * dilation2
    params2 = _make_params(kp2, C2, C2, K2, with_downsample=False)
    x2 = jax.random.normal(kx2, (B2, C2, T2), jnp.float32)
    out2 = jax.block_until_ready(temporal_block_forward(
        x2, params2, kernel_size=K2, stride=stride, dilation=dilation2,
        padding=padding2, compute_dtype=jnp.float32, max_tile_t=128))
    ref2 = temporal_block_reference(
        x2, params2, kernel_size=K2, stride=stride, dilation=dilation2,
        padding=padding2)
    np.testing.assert_allclose(np.asarray(out2), np.asarray(ref2),
                               rtol=1e-5, atol=1e-5)

    # --- Test 3: bf16 compute path (v6e/v7x MXU-friendly), looser tolerance --
    out3 = jax.block_until_ready(temporal_block_forward(
        x1, params1, kernel_size=K, stride=stride, dilation=dilation,
        padding=padding, compute_dtype=jnp.bfloat16))
    np.testing.assert_allclose(np.asarray(out3), np.asarray(ref1),
                               rtol=2e-2, atol=2e-2)

    # --- Test 4: per-tap accumulated-dot path (larger channels), multi-tile --
    B4, Cin4, Cout4, T4 = 2, 96, 128, 256
    K4, dilation4 = 3, 1
    padding4 = (K4 - 1) * dilation4
    params4 = _make_params(kp4, Cin4, Cout4, K4, with_downsample=True)
    x4 = jax.random.normal(kx4, (B4, Cin4, T4), jnp.float32)
    out4 = jax.block_until_ready(temporal_block_forward(
        x4, params4, kernel_size=K4, stride=stride, dilation=dilation4,
        padding=padding4, compute_dtype=jnp.float32, max_tile_t=128))
    ref4 = temporal_block_reference(
        x4, params4, kernel_size=K4, stride=stride, dilation=dilation4,
        padding=padding4)
    np.testing.assert_allclose(np.asarray(out4), np.asarray(ref4),
                               rtol=2e-2, atol=2e-3)

    print("KERNEL_OK")
</pallas_src>

<mosaic_0001>
module attributes {stable_mosaic.version = 11 : i64} {
  func.func @_temporal_block_kernel(%arg0: i32, %arg1: i32, %arg2: memref<1x4x16xf32, #tpu.memory_space<vmem>>, %arg3: memref<8x12xf32, #tpu.memory_space<vmem>>, %arg4: memref<8x1xf32, #tpu.memory_space<vmem>>, %arg5: memref<8x24xf32, #tpu.memory_space<vmem>>, %arg6: memref<8x1xf32, #tpu.memory_space<vmem>>, %arg7: memref<8x4xf32, #tpu.memory_space<vmem>>, %arg8: memref<8x1xf32, #tpu.memory_space<vmem>>, %arg9: memref<1x8x16xf32, #tpu.memory_space<vmem>>, %arg10: memref<4x144xf32, #tpu.memory_space<vmem>>, %arg11: memref<8x144xf32, #tpu.memory_space<vmem>>) attributes {dimension_semantics = [#tpu.dimension_semantics<parallel>, #tpu.dimension_semantics<arbitrary>], iteration_bounds = array<i64: 2, 1>, scalar_prefetch = 0 : i64, scratch_operands = 2 : i64, tpu.core_type = #tpu.core_type<tc>, window_params = [{transform_indices = @transform_0, window_bounds = array<i64: 1, 4, 16>}, {pipeline_mode = #tpu.pipeline_mode<synchronous>, transform_indices = @transform_1, window_bounds = array<i64: 8, 12>}, {pipeline_mode = #tpu.pipeline_mode<synchronous>, transform_indices = @transform_2, window_bounds = array<i64: 8, 1>}, {pipeline_mode = #tpu.pipeline_mode<synchronous>, transform_indices = @transform_3, window_bounds = array<i64: 8, 24>}, {pipeline_mode = #tpu.pipeline_mode<synchronous>, transform_indices = @transform_4, window_bounds = array<i64: 8, 1>}, {pipeline_mode = #tpu.pipeline_mode<synchronous>, transform_indices = @transform_5, window_bounds = array<i64: 8, 4>}, {pipeline_mode = #tpu.pipeline_mode<synchronous>, transform_indices = @transform_6, window_bounds = array<i64: 8, 1>}, {transform_indices = @transform_7, window_bounds = array<i64: 1, 8, 16>}]} {
    %c0_i32 = arith.constant 0 : i32
    %0 = arith.cmpi eq, %arg1, %c0_i32 : i32
    %1 = arith.extui %0 : i1 to i32
    %c0_i32_0 = arith.constant 0 : i32
    %2 = arith.cmpi ne, %1, %c0_i32_0 : i32
    scf.if %2 {
      %cst_32 = arith.constant 0.000000e+00 : f32
      %38 = vector.broadcast %cst_32 : f32 to vector<4x4xf32>
      %c0_33 = arith.constant 0 : index
      %c124_34 = arith.constant 124 : index
      %39 = vector.load %arg10[%c0_33, %c124_34] : memref<4x144xf32, #tpu.memory_space<vmem>>, vector<4x4xf32>
      tpu.vector_store %arg10[%c0_33, %c124_34], %38 {strides = array<i32>} : memref<4x144xf32, #tpu.memory_space<vmem>>, vector<4x4xf32>,
      %cst_35 = arith.constant 0.000000e+00 : f32
      %40 = vector.broadcast %cst_35 : f32 to vector<8x4xf32>
      %c0_36 = arith.constant 0 : index
      %c124_37 = arith.constant 124 : index
      %41 = vector.load %arg11[%c0_36, %c124_37] : memref<8x144xf32, #tpu.memory_space<vmem>>, vector<8x4xf32>
      tpu.vector_store %arg11[%c0_36, %c124_37], %40 {strides = array<i32>} : memref<8x144xf32, #tpu.memory_space<vmem>>, vector<8x4xf32>,
    } else {
    }
    %c0 = arith.constant 0 : index
    %c0_1 = arith.constant 0 : index
    %c0_2 = arith.constant 0 : index
    %3 = vector.load %arg2[%c0, %c0_1, %c0_2] : memref<1x4x16xf32, #tpu.memory_space<vmem>>, vector<1x4x16xf32>
    %4 = vector.shape_cast %3 : vector<1x4x16xf32> to vector<4x16xf32>
    %c0_3 = arith.constant 0 : index
    %c128 = arith.constant 128 : index
    %5 = vector.load %arg10[%c0_3, %c128] : memref<4x144xf32, #tpu.memory_space<vmem>>, vector<4x16xf32>
    tpu.vector_store %arg10[%c0_3, %c128], %4 {strides = array<i32>} : memref<4x144xf32, #tpu.memory_space<vmem>>, vector<4x16xf32>,
    %c0_4 = arith.constant 0 : index
    %c124 = arith.constant 124 : index
    %6 = vector.load %arg10[%c0_4, %c124] : memref<4x144xf32, #tpu.memory_space<vmem>>, vector<4x16xf32>
    %c0_5 = arith.constant 0 : index
    %c126 = arith.constant 126 : index
    %7 = vector.load %arg10[%c0_5, %c126] : memref<4x144xf32, #tpu.memory_space<vmem>>, vector<4x16xf32>
    %8 = tpu.concatenate %6, %7, %4 in 0 : vector<4x16xf32>, vector<4x16xf32>, vector<4x16xf32> -> vector<12x16xf32>
    %c0_6 = arith.constant 0 : index
    %c0_7 = arith.constant 0 : index
    %9 = vector.load %arg3[%c0_6, %c0_7] : memref<8x12xf32, #tpu.memory_space<vmem>>, vector<8x12xf32>
    %cst = arith.constant dense<0.000000e+00> : vector<8x16xf32>
    %10 = tpu.matmul %9, %8, %cst {dimension_numbers = #tpu.dot_dimension_numbers<[1], [0], [0], [1], [0, 0, 1, 1], [], []>} : vector<8x12xf32>, vector<12x16xf32>, vector<8x16xf32> -> vector<8x16xf32>
    %c0_8 = arith.constant 0 : index
    %c0_9 = arith.constant 0 : index
    %11 = vector.load %arg4[%c0_8, %c0_9] : memref<8x1xf32, #tpu.memory_space<vmem>>, vector<8x1xf32>
    %12 = vector.broadcast %11 : vector<8x1xf32> to vector<8x16xf32>
    %13 = arith.addf %10, %12 : vector<8x16xf32>
    %cst_10 = arith.constant 0.000000e+00 : f32
    %14 = vector.broadcast %cst_10 : f32 to vector<8x16xf32>
    %15 = arith.maximumf %13, %14 : vector<8x16xf32>
    %c0_11 = arith.constant 0 : index
    %c128_12 = arith.constant 128 : index
    %16 = vector.load %arg11[%c0_11, %c128_12] : memref<8x144xf32, #tpu.memory_space<vmem>>, vector<8x16xf32>
    tpu.vector_store %arg11[%c0_11, %c128_12], %15 {strides = array<i32>} : memref<8x144xf32, #tpu.memory_space<vmem>>, vector<8x16xf32>,
    %c0_13 = arith.constant 0 : index
    %c124_14 = arith.constant 124 : index
    %17 = vector.load %arg11[%c0_13, %c124_14] : memref<8x144xf32, #tpu.memory_space<vmem>>, vector<8x16xf32>
    %c0_15 = arith.constant 0 : index
    %c126_16 = arith.constant 126 : index
    %18 = vector.load %arg11[%c0_15, %c126_16] : memref<8x144xf32, #tpu.memory_space<vmem>>, vector<8x16xf32>
    %19 = tpu.concatenate %17, %18, %15 in 0 : vector<8x16xf32>, vector<8x16xf32>, vector<8x16xf32> -> vector<24x16xf32>
    %c0_17 = arith.constant 0 : index
    %c0_18 = arith.constant 0 : index
    %20 = vector.load %arg5[%c0_17, %c0_18] : memref<8x24xf32, #tpu.memory_space<vmem>>, vector<8x24xf32>
    %cst_19 = arith.constant dense<0.000000e+00> : vector<8x16xf32>
    %21 = tpu.matmul %20, %19, %cst_19 {dimension_numbers = #tpu.dot_dimension_numbers<[1], [0], [0], [1], [0, 0, 1, 1], [], []>} : vector<8x24xf32>, vector<24x16xf32>, vector<8x16xf32> -> vector<8x16xf32>
    %c0_20 = arith.constant 0 : index
    %c0_21 = arith.constant 0 : index
    %22 = vector.load %arg6[%c0_20, %c0_21] : memref<8x1xf32, #tpu.memory_space<vmem>>, vector<8x1xf32>
    %23 = vector.broadcast %22 : vector<8x1xf32> to vector<8x16xf32>
    %24 = arith.addf %21, %23 : vector<8x16xf32>
    %cst_22 = arith.constant 0.000000e+00 : f32
    %25 = vector.broadcast %cst_22 : f32 to vector<8x16xf32>
    %26 = arith.maximumf %24, %25 : vector<8x16xf32>
    %c0_23 = arith.constant 0 : index
    %c0_24 = arith.constant 0 : index
    %27 = vector.load %arg7[%c0_23, %c0_24] : memref<8x4xf32, #tpu.memory_space<vmem>>, vector<8x4xf32>
    %cst_25 = arith.constant dense<0.000000e+00> : vector<8x16xf32>
    %28 = tpu.matmul %27, %4, %cst_25 {dimension_numbers = #tpu.dot_dimension_numbers<[1], [0], [0], [1], [0, 0, 1, 1], [], []>} : vector<8x4xf32>, vector<4x16xf32>, vector<8x16xf32> -> vector<8x16xf32>
    %c0_26 = arith.constant 0 : index
    %c0_27 = arith.constant 0 : index
    %29 = vector.load %arg8[%c0_26, %c0_27] : memref<8x1xf32, #tpu.memory_space<vmem>>, vector<8x1xf32>
    %30 = vector.broadcast %29 : vector<8x1xf32> to vector<8x16xf32>
    %31 = arith.addf %28, %30 : vector<8x16xf32>
    %32 = arith.addf %26, %31 : vector<8x16xf32>
    %cst_28 = arith.constant 0.000000e+00 : f32
    %33 = vector.broadcast %cst_28 : f32 to vector<8x16xf32>
    %34 = arith.maximumf %32, %33 : vector<8x16xf32>
    %c0_29 = arith.constant 0 : index
    %c0_30 = arith.constant 0 : index
    %c0_31 = arith.constant 0 : index
    %35 = vector.load %arg9[%c0_29, %c0_30, %c0_31] : memref<1x8x16xf32, #tpu.memory_space<vmem>>, vector<1x8x16xf32>
    %36 = vector.shape_cast %35 : vector<1x8x16xf32> to vector<8x16xf32>
    %37 = vector.shape_cast %34 : vector<8x16xf32> to vector<1x8x16xf32>
    tpu.vector_store %arg9[%c0_29, %c0_30, %c0_31], %37 {strides = array<i32>} : memref<1x8x16xf32, #tpu.memory_space<vmem>>, vector<1x8x16xf32>,
    return
  }
  func.func @transform_0(%arg0: i32, %arg1: i32) -> (i32, i32, i32) {
    %c0_i32 = arith.constant 0 : i32
    %c0_i32_0 = arith.constant 0 : i32
    return %arg0, %c0_i32, %arg1 : i32, i32, i32
  }
  func.func @transform_1(%arg0: i32, %arg1: i32) -> (i32, i32) {
    %c0_i32 = arith.constant 0 : i32
    %c0_i32_0 = arith.constant 0 : i32
    %c0_i32_1 = arith.constant 0 : i32
    return %c0_i32, %c0_i32_0 : i32, i32
  }
  func.func @transform_2(%arg0: i32, %arg1: i32) -> (i32, i32) {
    %c0_i32 = arith.constant 0 : i32
    %c0_i32_0 = arith.constant 0 : i32
    %c0_i32_1 = arith.constant 0 : i32
    return %c0_i32, %c0_i32_0 : i32, i32
  }
  func.func @transform_3(%arg0: i32, %arg1: i32) -> (i32, i32) {
    %c0_i32 = arith.constant 0 : i32
    %c0_i32_0 = arith.constant 0 : i32
    %c0_i32_1 = arith.constant 0 : i32
    return %c0_i32, %c0_i32_0 : i32, i32
  }
  func.func @transform_4(%arg0: i32, %arg1: i32) -> (i32, i32) {
    %c0_i32 = arith.constant 0 : i32
    %c0_i32_0 = arith.constant 0 : i32
    %c0_i32_1 = arith.constant 0 : i32
    return %c0_i32, %c0_i32_0 : i32, i32
  }
  func.func @transform_5(%arg0: i32, %arg1: i32) -> (i32, i32) {
    %c0_i32 = arith.constant 0 : i32
    %c0_i32_0 = arith.constant 0 : i32
    %c0_i32_1 = arith.constant 0 : i32
    return %c0_i32, %c0_i32_0 : i32, i32
  }
  func.func @transform_6(%arg0: i32, %arg1: i32) -> (i32, i32) {
    %c0_i32 = arith.constant 0 : i32
    %c0_i32_0 = arith.constant 0 : i32
    %c0_i32_1 = arith.constant 0 : i32
    return %c0_i32, %c0_i32_0 : i32, i32
  }
  func.func @transform_7(%arg0: i32, %arg1: i32) -> (i32, i32, i32) {
    %c0_i32 = arith.constant 0 : i32
    %c0_i32_0 = arith.constant 0 : i32
    return %arg0, %c0_i32, %arg1 : i32, i32, i32
  }
}

module attributes {stable_mosaic.version = 11 : i64} {
  func.func @_temporal_block_kernel(%arg0: i32, %arg1: i32, %arg2: memref<1x4x16xf32, #tpu.memory_space<vmem>>, %arg3: memref<8x12xf32, #tpu.memory_space<vmem>>, %arg4: memref<8x1xf32, #tpu.memory_space<vmem>>, %arg5: memref<8x24xf32, #tpu.memory_space<vmem>>, %arg6: memref<8x1xf32, #tpu.memory_space<vmem>>, %arg7: memref<8x4xf32, #tpu.memory_space<vmem>>, %arg8: memref<8x1xf32, #tpu.memory_space<vmem>>, %arg9: memref<1x8x16xf32, #tpu.memory_space<vmem>>, %arg10: memref<4x144xf32, #tpu.memory_space<vmem>>, %arg11: memref<8x144xf32, #tpu.memory_space<vmem>>) attributes {dimension_semantics = [#tpu.dimension_semantics<parallel>, #tpu.dimension_semantics<arbitrary>], iteration_bounds = array<i64: 2, 1>, scalar_prefetch = 0 : i64, scratch_operands = 2 : i64, tpu.core_type = #tpu.core_type<tc>, window_params = [{transform_indices = @transform_0, window_bounds = array<i64: 1, 4, 16>}, {pipeline_mode = #tpu.pipeline_mode<synchronous>, transform_indices = @transform_1, window_bounds = array<i64: 8, 12>}, {pipeline_mode = #tpu.pipeline_mode<synchronous>, transform_indices = @transform_2, window_bounds = array<i64: 8, 1>}, {pipeline_mode = #tpu.pipeline_mode<synchronous>, transform_indices = @transform_3, window_bounds = array<i64: 8, 24>}, {pipeline_mode = #tpu.pipeline_mode<synchronous>, transform_indices = @transform_4, window_bounds = array<i64: 8, 1>}, {pipeline_mode = #tpu.pipeline_mode<synchronous>, transform_indices = @transform_5, window_bounds = array<i64: 8, 4>}, {pipeline_mode = #tpu.pipeline_mode<synchronous>, transform_indices = @transform_6, window_bounds = array<i64: 8, 1>}, {transform_indices = @transform_7, window_bounds = array<i64: 1, 8, 16>}]} {
    %c0_i32 = arith.constant 0 : i32
    %0 = arith.cmpi eq, %arg1, %c0_i32 : i32
    %1 = arith.extui %0 : i1 to i32
    %c0_i32_0 = arith.constant 0 : i32
    %2 = arith.cmpi ne, %1, %c0_i32_0 : i32
    scf.if %2 {
      %cst_32 = arith.constant 0.000000e+00 : f32
      %38 = vector.broadcast %cst_32 : f32 to vector<4x4xf32>
      %c0_33 = arith.constant 0 : index
      %c124_34 = arith.constant 124 : index
      %39 = vector.load %arg10[%c0_33, %c124_34] : memref<4x144xf32, #tpu.memory_space<vmem>>, vector<4x4xf32>
      tpu.vector_store %arg10[%c0_33, %c124_34], %38 {strides = array<i32>} : memref<4x144xf32, #tpu.memory_space<vmem>>, vector<4x4xf32>,
      %cst_35 = arith.constant 0.000000e+00 : f32
      %40 = vector.broadcast %cst_35 : f32 to vector<8x4xf32>
      %c0_36 = arith.constant 0 : index
      %c124_37 = arith.constant 124 : index
      %41 = vector.load %arg11[%c0_36, %c124_37] : memref<8x144xf32, #tpu.memory_space<vmem>>, vector<8x4xf32>
      tpu.vector_store %arg11[%c0_36, %c124_37], %40 {strides = array<i32>} : memref<8x144xf32, #tpu.memory_space<vmem>>, vector<8x4xf32>,
    } else {
    }
    %c0 = arith.constant 0 : index
    %c0_1 = arith.constant 0 : index
    %c0_2 = arith.constant 0 : index
    %3 = vector.load %arg2[%c0, %c0_1, %c0_2] : memref<1x4x16xf32, #tpu.memory_space<vmem>>, vector<1x4x16xf32>
    %4 = vector.shape_cast %3 : vector<1x4x16xf32> to vector<4x16xf32>
    %c0_3 = arith.constant 0 : index
    %c128 = arith.constant 128 : index
    %5 = vector.load %arg10[%c0_3, %c128] : memref<4x144xf32, #tpu.memory_space<vmem>>, vector<4x16xf32>
    tpu.vector_store %arg10[%c0_3, %c128], %4 {strides = array<i32>} : memref<4x144xf32, #tpu.memory_space<vmem>>, vector<4x16xf32>,
    %c0_4 = arith.constant 0 : index
    %c124 = arith.constant 124 : index
    %6 = vector.load %arg10[%c0_4, %c124] : memref<4x144xf32, #tpu.memory_space<vmem>>, vector<4x16xf32>
    %c0_5 = arith.constant 0 : index
    %c126 = arith.constant 126 : index
    %7 = vector.load %arg10[%c0_5, %c126] : memref<4x144xf32, #tpu.memory_space<vmem>>, vector<4x16xf32>
    %8 = tpu.concatenate %6, %7, %4 in 0 : vector<4x16xf32>, vector<4x16xf32>, vector<4x16xf32> -> vector<12x16xf32>
    %c0_6 = arith.constant 0 : index
    %c0_7 = arith.constant 0 : index
    %9 = vector.load %arg3[%c0_6, %c0_7] : memref<8x12xf32, #tpu.memory_space<vmem>>, vector<8x12xf32>
    %cst = arith.constant dense<0.000000e+00> : vector<8x16xf32>
    %10 = tpu.matmul %9, %8, %cst {dimension_numbers = #tpu.dot_dimension_numbers<[1], [0], [0], [1], [0, 0, 1, 1], [], []>} : vector<8x12xf32>, vector<12x16xf32>, vector<8x16xf32> -> vector<8x16xf32>
    %c0_8 = arith.constant 0 : index
    %c0_9 = arith.constant 0 : index
    %11 = vector.load %arg4[%c0_8, %c0_9] : memref<8x1xf32, #tpu.memory_space<vmem>>, vector<8x1xf32>
    %12 = vector.broadcast %11 : vector<8x1xf32> to vector<8x16xf32>
    %13 = arith.addf %10, %12 : vector<8x16xf32>
    %cst_10 = arith.constant 0.000000e+00 : f32
    %14 = vector.broadcast %cst_10 : f32 to vector<8x16xf32>
    %15 = arith.maximumf %13, %14 : vector<8x16xf32>
    %c0_11 = arith.constant 0 : index
    %c128_12 = arith.constant 128 : index
    %16 = vector.load %arg11[%c0_11, %c128_12] : memref<8x144xf32, #tpu.memory_space<vmem>>, vector<8x16xf32>
    tpu.vector_store %arg11[%c0_11, %c128_12], %15 {strides = array<i32>} : memref<8x144xf32, #tpu.memory_space<vmem>>, vector<8x16xf32>,
    %c0_13 = arith.constant 0 : index
    %c124_14 = arith.constant 124 : index
    %17 = vector.load %arg11[%c0_13, %c124_14] : memref<8x144xf32, #tpu.memory_space<vmem>>, vector<8x16xf32>
    %c0_15 = arith.constant 0 : index
    %c126_16 = arith.constant 126 : index
    %18 = vector.load %arg11[%c0_15, %c126_16] : memref<8x144xf32, #tpu.memory_space<vmem>>, vector<8x16xf32>
    %19 = tpu.concatenate %17, %18, %15 in 0 : vector<8x16xf32>, vector<8x16xf32>, vector<8x16xf32> -> vector<24x16xf32>
    %c0_17 = arith.constant 0 : index
    %c0_18 = arith.constant 0 : index
    %20 = vector.load %arg5[%c0_17, %c0_18] : memref<8x24xf32, #tpu.memory_space<vmem>>, vector<8x24xf32>
    %cst_19 = arith.constant dense<0.000000e+00> : vector<8x16xf32>
    %21 = tpu.matmul %20, %19, %cst_19 {dimension_numbers = #tpu.dot_dimension_numbers<[1], [0], [0], [1], [0, 0, 1, 1], [], []>} : vector<8x24xf32>, vector<24x16xf32>, vector<8x16xf32> -> vector<8x16xf32>
    %c0_20 = arith.constant 0 : index
    %c0_21 = arith.constant 0 : index
    %22 = vector.load %arg6[%c0_20, %c0_21] : memref<8x1xf32, #tpu.memory_space<vmem>>, vector<8x1xf32>
    %23 = vector.broadcast %22 : vector<8x1xf32> to vector<8x16xf32>
    %24 = arith.addf %21, %23 : vector<8x16xf32>
    %cst_22 = arith.constant 0.000000e+00 : f32
    %25 = vector.broadcast %cst_22 : f32 to vector<8x16xf32>
    %26 = arith.maximumf %24, %25 : vector<8x16xf32>
    %c0_23 = arith.constant 0 : index
    %c0_24 = arith.constant 0 : index
    %27 = vector.load %arg7[%c0_23, %c0_24] : memref<8x4xf32, #tpu.memory_space<vmem>>, vector<8x4xf32>
    %cst_25 = arith.constant dense<0.000000e+00> : vector<8x16xf32>
    %28 = tpu.matmul %27, %4, %cst_25 {dimension_numbers = #tpu.dot_dimension_numbers<[1], [0], [0], [1], [0, 0, 1, 1], [], []>} : vector<8x4xf32>, vector<4x16xf32>, vector<8x16xf32> -> vector<8x16xf32>
    %c0_26 = arith.constant 0 : index
    %c0_27 = arith.constant 0 : index
    %29 = vector.load %arg8[%c0_26, %c0_27] : memref<8x1xf32, #tpu.memory_space<vmem>>, vector<8x1xf32>
    %30 = vector.broadcast %29 : vector<8x1xf32> to vector<8x16xf32>
    %31 = arith.addf %28, %30 : vector<8x16xf32>
    %32 = arith.addf %26, %31 : vector<8x16xf32>
    %cst_28 = arith.constant 0.000000e+00 : f32
    %33 = vector.broadcast %cst_28 : f32 to vector<8x16xf32>
    %34 = arith.maximumf %32, %33 : vector<8x16xf32>
    %c0_29 = arith.constant 0 : index
    %c0_30 = arith.constant 0 : index
    %c0_31 = arith.constant 0 : index
    %35 = vector.load %arg9[%c0_29, %c0_30, %c0_31] : memref<1x8x16xf32, #tpu.memory_space<vmem>>, vector<1x8x16xf32>
    %36 = vector.shape_cast %35 : vector<1x8x16xf32> to vector<8x16xf32>
    %37 = vector.shape_cast %34 : vector<8x16xf32> to vector<1x8x16xf32>
    tpu.vector_store %arg9[%c0_29, %c0_30, %c0_31], %37 {strides = array<i32>} : memref<1x8x16xf32, #tpu.memory_space<vmem>>, vector<1x8x16xf32>,
    return
  }
  func.func @transform_0(%arg0: i32, %arg1: i32) -> (i32, i32, i32) {
    %c0_i32 = arith.constant 0 : i32
    %c0_i32_0 = arith.constant 0 : i32
    return %arg0, %c0_i32, %arg1 : i32, i32, i32
  }
  func.func @transform_1(%arg0: i32, %arg1: i32) -> (i32, i32) {
    %c0_i32 = arith.constant 0 : i32
    %c0_i32_0 = arith.constant 0 : i32
    %c0_i32_1 = arith.constant 0 : i32
    return %c0_i32, %c0_i32_0 : i32, i32
  }
  func.func @transform_2(%arg0: i32, %arg1: i32) -> (i32, i32) {
    %c0_i32 = arith.constant 0 : i32
    %c0_i32_0 = arith.constant 0 : i32
    %c0_i32_1 = arith.constant 0 : i32
    return %c0_i32, %c0_i32_0 : i32, i32
  }
  func.func @transform_3(%arg0: i32, %arg1: i32) -> (i32, i32) {
    %c0_i32 = arith.constant 0 : i32
    %c0_i32_0 = arith.constant 0 : i32
    %c0_i32_1 = arith.constant 0 : i32
    return %c0_i32, %c0_i32_0 : i32, i32
  }
  func.func @transform_4(%arg0: i32, %arg1: i32) -> (i32, i32) {
    %c0_i32 = arith.constant 0 : i32
    %c0_i32_0 = arith.constant 0 : i32
    %c0_i32_1 = arith.constant 0 : i32
    return %c0_i32, %c0_i32_0 : i32, i32
  }
  func.func @transform_5(%arg0: i32, %arg1: i32) -> (i32, i32) {
    %c0_i32 = arith.constant 0 : i32
    %c0_i32_0 = arith.constant 0 : i32
    %c0_i32_1 = arith.constant 0 : i32
    return %c0_i32, %c0_i32_0 : i32, i32
  }
  func.func @transform_6(%arg0: i32, %arg1: i32) -> (i32, i32) {
    %c0_i32 = arith.constant 0 : i32
    %c0_i32_0 = arith.constant 0 : i32
    %c0_i32_1 = arith.constant 0 : i32
    return %c0_i32, %c0_i32_0 : i32, i32
  }
  func.func @transform_7(%arg0: i32, %arg1: i32) -> (i32, i32, i32) {
    %c0_i32 = arith.constant 0 : i32
    %c0_i32_0 = arith.constant 0 : i32
    return %arg0, %c0_i32, %arg1 : i32, i32, i32
  }
}

</mosaic_0001>

<llo_original>
// kernel: tpu_custom_call.1
$region0: #{tpu_custom_call.1}
  #allocation0 [shape = 'u32[]', space=smem, size = 0x4, offset = 0x4, fixed_abs, tag = 'smem constant byte address 0x4 - core index']
  #allocation1 [shape = 'u32[144,128]{1,0:T(1,128)}', space=vmem, size = 0x12000, scoped, tag = 'internal scratch']
  #allocation2 [shape = 'f32[4,144]{1,0:T(4,128)}', space=vmem, size = 0x1000, scoped, tag = 'scratch operand']
  #allocation3 [shape = 'f32[8,144]{1,0:T(8,128)}', space=vmem, size = 0x2000, scoped, tag = 'scratch operand']
  %s0 = inlined_call_operand.vmem [shape: f32[2,4,16], index: 0, kind: input, shape index: {}]
  %s1 = inlined_call_operand.vmem [shape: f32[8,12], index: 1, kind: input, shape index: {}]
  %s2 = inlined_call_operand.vmem [shape: f32[8,1], index: 2, kind: input, shape index: {}]
  %s3 = inlined_call_operand.vmem [shape: f32[8,24], index: 3, kind: input, shape index: {}]
  %s4 = inlined_call_operand.vmem [shape: f32[8,1], index: 4, kind: input, shape index: {}]
  %s5 = inlined_call_operand.vmem [shape: f32[8,4], index: 5, kind: input, shape index: {}]
  %s6 = inlined_call_operand.vmem [shape: f32[8,1], index: 6, kind: input, shape index: {}]
  %s7 = inlined_call_operand.hbm [shape: f32[2,8,16], index: 7, kind: output, shape index: {}]
  %s8 = sld [smem:[#allocation0]]
  $region65: #{tpu_custom_call.1} parent=0
    _
  %s10 = ssub.s32 1, %s8
  %s11 = scalar_select 0, %s10, %s8
  $region1: #{tpu_custom_call.1} parent=0
    #allocation4 [shape = 'u8[8192]{0}', space=vmem, size = 0x2000, scoped, tag = 'output window, operand 0']
    #allocation5 [shape = 's32[2]{0}', space=sflag, size = 0x8, scoped, tag = 'scoped memory for tpu_custom_call.1']
    %12 = vsyncpa [#allocation5], 0
    %s13 = scalar_lea.sflag [#allocation5], 1
    %14 = vsyncpa %s13, 0
    loop: start=0, step=1, limit=4
    $region2: #{tpu_custom_call.1} parent=1 // loop_pre_header
      _
    $region3: #{tpu_custom_call.1} parent=1 // loop_header
      %s16 = sphi 0, %s20
      %p17 = scmp.ge.s32.totalorder %s16, 4
      %s23 = sphi 0, %s35
      %s24 = sphi 0, %s31
      %s25 = sphi 0, %s23
      %s26 = sphi 0, %s24
      %s27 = sphi 0, %s25
      %s28 = sphi 0, %s26
      %s40 = sphi 0, %s42
      %s43 = sphi 0, %s40
      %s44 = sphi 0, %s43
      %s60 = sphi 0, %s44
      %s64 = sphi 0, %s64
      %s66 = sphi 0, %s64
      %s67 = sphi 0, %s66
      %s81 = sphi 0, %s67
      %s85 = sphi 0, %s85
      %s87 = sphi 0, %s85
      %s88 = sphi 0, %s87
      %s102 = sphi 0, %s88
      %s106 = sphi 0, %s106
      %s108 = sphi 0, %s106
      %s109 = sphi 0, %s108
      %s123 = sphi 0, %s109
      %s127 = sphi 0, %s127
      %s129 = sphi 0, %s127
      %s130 = sphi 0, %s129
      %s144 = sphi 0, %s130
      %s148 = sphi 0, %s148
      %s150 = sphi 0, %s148
      %s151 = sphi 0, %s150
      %s165 = sphi 0, %s151
      %s169 = sphi 0, %s169
      %s171 = sphi 0, %s169
      %s172 = sphi 0, %s171
      %s186 = sphi 0, %s172
      %s194 = sphi 0, %s196
      %s197 = sphi 0, %s194
      %s198 = sphi 0, %s197
      %s214 = sphi 0, %s198
    $region4: #{tpu_custom_call.1} parent=1 // loop_header_branch
      %19 = sbr.rel (%p17) target = $region8
    $region5: #{tpu_custom_call.1} parent=1 // loop_body
      %s21 = ssub.s32 %s16, 1
      %s22 = ssub.s32 %s16, 2
      %s29 = sadd.s32 1, %s24
      %p30 = scmp.ge.s32.totalorder %s29, 1
      %s31 = scalar_select %p30, 0, %s29
      %s32 = sadd.s32 1, %s23
      %s33 = scalar_select %p30, %s32, %s23
      %p34 = scmp.ge.s32.totalorder %s33, 2
      %s35 = scalar_select %p34, 0, %s33
      %s36 = ssub.s32 %s23, %s35
      %s37 = ssub.s32 %s24, %s31
      %s38 = sor.u32 %s36, %s37
      %p39 = scmp.eq.s32.totalorder %s38, 0
      %s41 = sadd.s32 %s40, 1
      %s42 = scalar_select %p39, %s40, %s41
      %p45 = pneg %p39
      %p46 = scmp.eq.s32.totalorder %s16, 1
      %p47 = por %p45, %p46
      %p48 = scmp.ne.s32.totalorder %s40, %s43
      %p49 = scmp.eq.s32.totalorder %s16, 0
      %p50 = por %p48, %p49
      %p51 = scmp.ne.s32.totalorder %s40, %s43
      %p52 = scmp.eq.s32.totalorder %s21, 1
      %p53 = por %p51, %p52
      %p54 = scmp.ne.s32.totalorder %s43, %s44
      %p55 = scmp.eq.s32.totalorder %s21, 0
      %p56 = por %p54, %p55
      %p57 = scmp.ne.s32.totalorder %s43, %s44
      %p58 = scmp.eq.s32.totalorder %s22, 1
      %p59 = por %p57, %p58
      %p61 = scmp.ne.s32.totalorder %s44, %s60
      %p62 = scmp.eq.s32.totalorder %s22, 0
      %p63 = por %p61, %p62
      %s65 = sadd.s32 %s64, 1
      %p68 = scmp.eq.s32.totalorder %s16, 1
      %p69 = scmp.ne.s32.totalorder %s64, %s66
      %p70 = scmp.eq.s32.totalorder %s16, 0
      %p71 = por %p69, %p70
      %p72 = scmp.ne.s32.totalorder %s64, %s66
      %p73 = scmp.eq.s32.totalorder %s21, 1
      %p74 = por %p72, %p73
      %p75 = scmp.ne.s32.totalorder %s66, %s67
      %p76 = scmp.eq.s32.totalorder %s21, 0
      %p77 = por %p75, %p76
      %p78 = scmp.ne.s32.totalorder %s66, %s67
      %p79 = scmp.eq.s32.totalorder %s22, 1
      %p80 = por %p78, %p79
      %p82 = scmp.ne.s32.totalorder %s67, %s81
      %p83 = scmp.eq.s32.totalorder %s22, 0
      %p84 = por %p82, %p83
      %s86 = sadd.s32 %s85, 1
      %p89 = scmp.eq.s32.totalorder %s16, 1
      %p90 = scmp.ne.s32.totalorder %s85, %s87
      %p91 = scmp.eq.s32.totalorder %s16, 0
      %p92 = por %p90, %p91
      %p93 = scmp.ne.s32.totalorder %s85, %s87
      %p94 = scmp.eq.s32.totalorder %s21, 1
      %p95 = por %p93, %p94
      %p96 = scmp.ne.s32.totalorder %s87, %s88
      %p97 = scmp.eq.s32.totalorder %s21, 0
      %p98 = por %p96, %p97
      %p99 = scmp.ne.s32.totalorder %s87, %s88
      %p100 = scmp.eq.s32.totalorder %s22, 1
      %p101 = por %p99, %p100
      %p103 = scmp.ne.s32.totalorder %s88, %s102
      %p104 = scmp.eq.s32.totalorder %s22, 0
      %p105 = por %p103, %p104
      %s107 = sadd.s32 %s106, 1
      %p110 = scmp.eq.s32.totalorder %s16, 1
      %p111 = scmp.ne.s32.totalorder %s106, %s108
      %p112 = scmp.eq.s32.totalorder %s16, 0
      %p113 = por %p111, %p112
      %p114 = scmp.ne.s32.totalorder %s106, %s108
      %p115 = scmp.eq.s32.totalorder %s21, 1
      %p116 = por %p114, %p115
      %p117 = scmp.ne.s32.totalorder %s108, %s109
      %p118 = scmp.eq.s32.totalorder %s21, 0
      %p119 = por %p117, %p118
      %p120 = scmp.ne.s32.totalorder %s108, %s109
      %p121 = scmp.eq.s32.totalorder %s22, 1
      %p122 = por %p120, %p121
      %p124 = scmp.ne.s32.totalorder %s109, %s123
      %p125 = scmp.eq.s32.totalorder %s22, 0
      %p126 = por %p124, %p125
      %s128 = sadd.s32 %s127, 1
      %p131 = scmp.eq.s32.totalorder %s16, 1
      %p132 = scmp.ne.s32.totalorder %s127, %s129
      %p133 = scmp.eq.s32.totalorder %s16, 0
      %p134 = por %p132, %p133
      %p135 = scmp.ne.s32.totalorder %s127, %s129
      %p136 = scmp.eq.s32.totalorder %s21, 1
      %p137 = por %p135, %p136
      %p138 = scmp.ne.s32.totalorder %s129, %s130
      %p139 = scmp.eq.s32.totalorder %s21, 0
      %p140 = por %p138, %p139
      %p141 = scmp.ne.s32.totalorder %s129, %s130
      %p142 = scmp.eq.s32.totalorder %s22, 1
      %p143 = por %p141, %p142
      %p145 = scmp.ne.s32.totalorder %s130, %s144
      %p146 = scmp.eq.s32.totalorder %s22, 0
      %p147 = por %p145, %p146
      %s149 = sadd.s32 %s148, 1
      %p152 = scmp.eq.s32.totalorder %s16, 1
      %p153 = scmp.ne.s32.totalorder %s148, %s150
      %p154 = scmp.eq.s32.totalorder %s16, 0
      %p155 = por %p153, %p154
      %p156 = scmp.ne.s32.totalorder %s148, %s150
      %p157 = scmp.eq.s32.totalorder %s21, 1
      %p158 = por %p156, %p157
      %p159 = scmp.ne.s32.totalorder %s150, %s151
      %p160 = scmp.eq.s32.totalorder %s21, 0
      %p161 = por %p159, %p160
      %p162 = scmp.ne.s32.totalorder %s150, %s151
      %p163 = scmp.eq.s32.totalorder %s22, 1
      %p164 = por %p162, %p163
      %p166 = scmp.ne.s32.totalorder %s151, %s165
      %p167 = scmp.eq.s32.totalorder %s22, 0
      %p168 = por %p166, %p167
      %s170 = sadd.s32 %s169, 1
      %p173 = scmp.eq.s32.totalorder %s16, 1
      %p174 = scmp.ne.s32.totalorder %s169, %s171
      %p175 = scmp.eq.s32.totalorder %s16, 0
      %p176 = por %p174, %p175
      %p177 = scmp.ne.s32.totalorder %s169, %s171
      %p178 = scmp.eq.s32.totalorder %s21, 1
      %p179 = por %p177, %p178
      %p180 = scmp.ne.s32.totalorder %s171, %s172
      %p181 = scmp.eq.s32.totalorder %s21, 0
      %p182 = por %p180, %p181
      %p183 = scmp.ne.s32.totalorder %s171, %s172
      %p184 = scmp.eq.s32.totalorder %s22, 1
      %p185 = por %p183, %p184
      %p187 = scmp.ne.s32.totalorder %s172, %s186
      %p188 = scmp.eq.s32.totalorder %s22, 0
      %p189 = por %p187, %p188
      %s190 = ssub.s32 %s23, %s35
      %s191 = ssub.s32 %s24, %s31
      %s192 = sor.u32 %s190, %s191
      %p193 = scmp.eq.s32.totalorder %s192, 0
      %s195 = sadd.s32 %s194, 1
      %s196 = scalar_select %p193, %s194, %s195
      %p199 = pneg %p193
      %p200 = scmp.eq.s32.totalorder %s16, 1
      %p201 = por %p199, %p200
      %p202 = scmp.ne.s32.totalorder %s194, %s197
      %p203 = scmp.eq.s32.totalorder %s16, 0
      %p204 = por %p202, %p203
      %p205 = scmp.ne.s32.totalorder %s194, %s197
      %p206 = scmp.eq.s32.totalorder %s21, 1
      %p207 = por %p205, %p206
      %p208 = scmp.ne.s32.totalorder %s197, %s198
      %p209 = scmp.eq.s32.totalorder %s21, 0
      %p210 = por %p208, %p209
      %p211 = scmp.ne.s32.totalorder %s197, %s198
      %p212 = scmp.eq.s32.totalorder %s22, 1
      %p213 = por %p211, %p212
      %p215 = scmp.ne.s32.totalorder %s198, %s214
      %p216 = scmp.eq.s32.totalorder %s22, 0
      %p217 = por %p215, %p216
      %p218 = scmp.le.s32.totalorder 1, %s16
      %p219 = scmp.lt.s32.totalorder %s16, 3
      %p220 = pnand %p218, %p219
      %p221 = pneg %p220
      // Predicated region
      $region9: #{tpu_custom_call.1} parent=5 // pred_check
        _
      $region10: #{tpu_custom_call.1} parent=5 // pred_check_branch
        %223 = sbr.rel (%p220) target = $region12
      $region11: #{tpu_custom_call.1} parent=5 // pred_region
        %s224 = ssub.s32 %s16, 1
        // Predicated region
        $region13: #{tpu_custom_call.1} parent=11 // pred_check
          %p225 = pneg %p77
        $region14: #{tpu_custom_call.1} parent=11 // pred_check_branch
          %227 = sbr.rel (%p225) target = $region16
        $region15: #{tpu_custom_call.1} parent=11 // pred_region
          _
        $region16: #{tpu_custom_call.1} parent=11 // pred_fallthru
          _
        // Predicated region
        $region17: #{tpu_custom_call.1} parent=11 // pred_check
          %p228 = pneg %p98
        $region18: #{tpu_custom_call.1} parent=11 // pred_check_branch
          %230 = sbr.rel (%p228) target = $region20
        $region19: #{tpu_custom_call.1} parent=11 // pred_region
          _
        $region20: #{tpu_custom_call.1} parent=11 // pred_fallthru
          _
        // Predicated region
        $region21: #{tpu_custom_call.1} parent=11 // pred_check
          %p231 = pneg %p119
        $region22: #{tpu_custom_call.1} parent=11 // pred_check_branch
          %233 = sbr.rel (%p231) target = $region24
        $region23: #{tpu_custom_call.1} parent=11 // pred_region
          _
        $region24: #{tpu_custom_call.1} parent=11 // pred_fallthru
          _
        // Predicated region
        $region25: #{tpu_custom_call.1} parent=11 // pred_check
          %p234 = pneg %p140
        $region26: #{tpu_custom_call.1} parent=11 // pred_check_branch
          %236 = sbr.rel (%p234) target = $region28
        $region27: #{tpu_custom_call.1} parent=11 // pred_region
          _
        $region28: #{tpu_custom_call.1} parent=11 // pred_fallthru
          _
        // Predicated region
        $region29: #{tpu_custom_call.1} parent=11 // pred_check
          %p237 = pneg %p161
        $region30: #{tpu_custom_call.1} parent=11 // pred_check_branch
          %239 = sbr.rel (%p237) target = $region32
        $region31: #{tpu_custom_call.1} parent=11 // pred_region
          _
        $region32: #{tpu_custom_call.1} parent=11 // pred_fallthru
          _
        // Predicated region
        $region33: #{tpu_custom_call.1} parent=11 // pred_check
          %p240 = pneg %p182
        $region34: #{tpu_custom_call.1} parent=11 // pred_check_branch
          %242 = sbr.rel (%p240) target = $region36
        $region35: #{tpu_custom_call.1} parent=11 // pred_region
          _
        $region36: #{tpu_custom_call.1} parent=11 // pred_fallthru
          _
      $region12: #{tpu_custom_call.1} parent=5 // pred_fallthru
        _
      %p243 = scmp.lt.s32.totalorder %s16, 2
      // Predicated region
      $region37: #{tpu_custom_call.1} parent=5 // pred_check
        %p244 = pneg %p243
      $region38: #{tpu_custom_call.1} parent=5 // pred_check_branch
        %246 = sbr.rel (%p244) target = $region40
      $region39: #{tpu_custom_call.1} parent=5 // pred_region
        // Predicated region
        $region41: #{tpu_custom_call.1} parent=39 // pred_check
          %p247 = pneg %p50
        $region42: #{tpu_custom_call.1} parent=39 // pred_check_branch
          %249 = sbr.rel (%p247) target = $region44
        $region43: #{tpu_custom_call.1} parent=39 // pred_region
          %p250 = scmp.lt.s32.totalorder %s23, 1
          %s251 = scalar_select %p250, %s23, 1
          %p252 = scmp.lt.s32.totalorder %s24, 0
          %s253 = scalar_select %p252, %s24, 0
          %s254 = sadd.s32 %s253, %s251
          %s255 = smul.addr %s254, 4
          %s256 = scalar_lea.vmem %s0, %s255
        $region44: #{tpu_custom_call.1} parent=39 // pred_fallthru
          _
      $region40: #{tpu_custom_call.1} parent=5 // pred_fallthru
        _
      %p257 = scmp.le.s32.totalorder 1, %s16
      %p258 = scmp.lt.s32.totalorder %s16, 3
      %p259 = pnand %p257, %p258
      %p260 = pneg %p259
      // Predicated region
      $region45: #{tpu_custom_call.1} parent=5 // pred_check
        _
      $region46: #{tpu_custom_call.1} parent=5 // pred_check_branch
        %262 = sbr.rel (%p259) target = $region48
      $region47: #{tpu_custom_call.1} parent=5 // pred_region
        %s263 = ssub.s32 %s16, 1
        %p264 = scmp.lt.s32.totalorder %s25, 1
        %s265 = scalar_select %p264, %s25, 1
        %p266 = scmp.lt.s32.totalorder %s26, 0
        %s267 = scalar_select %p266, %s26, 0
        %s268 = sadd.s32 %s267, %s265
        %s269 = smul.addr %s268, 4
        %s270 = scalar_lea.vmem %s0, %s269
        %p271 = pneg %p56
        %p272 = pneg %p53
        %p273 = pneg %p77
        %p274 = pneg %p74
        %p275 = pneg %p98
        %p276 = pneg %p95
        %p277 = pneg %p119
        %p278 = pneg %p116
        %p279 = pneg %p140
        %p280 = pneg %p137
        %p281 = pneg %p161
        %p282 = pneg %p158
        %p283 = pneg %p182
        %p284 = pneg %p179
        %p285 = pneg %p210
        %p286 = pneg %p207
        %s287 = sand.u32 %s197, 1
        %s288 = scalar_lea.sflag [#allocation5], %s287
        %s289 = sand.u32 %s197, 1
        %s290 = smul.addr %s289, 8
        %s291 = scalar_lea.vmem [#allocation4], %s290
        %p292 = scmp.lt.s32.totalorder %s25, 1
        %s293 = scalar_select %p292, %s25, 1
        %p294 = scmp.lt.s32.totalorder %s26, 0
        %s295 = scalar_select %p294, %s26, 0
        %s296 = sadd.s32 %s295, %s293
        %s297 = smul.addr %s296, 4
        %s298 = scalar_lea.vmem %s0, %s297
        %p299 = scmp.eq.s32.totalorder %s26, 0
        // Predicated region
        $region49: #{tpu_custom_call.1} parent=47 // pred_check
          %p300 = pneg %p299
        $region50: #{tpu_custom_call.1} parent=47 // pred_check_branch
          %302 = sbr.rel (%p300) target = $region52
        $region51: #{tpu_custom_call.1} parent=47 // pred_region
          %vm303 = vcmask 1044448
          %304 = vst.msk [vmem:[#allocation2] sm:$0xf] %vm303, 0.0
          %vm305 = vcmask 1048544
          %306 = vst.msk [vmem:[#allocation3] sm:$0xff] %vm305, 0.0
        $region52: #{tpu_custom_call.1} parent=47 // pred_fallthru
          _
        %v307 = vld [vmem:[%s298] sm:$0xf]
        %vm308 = vcmask 125952
        %309 = vst.msk [vmem:[#allocation2 + $0x4] sm:$0xf] %vm308, %v307
        %v310 = vld [vmem:[#allocation2] sm:$0xff]
        %v312 = vcombine.high %v310, %v310
        %v314 = vcombine.low %v310, %v310
        %315 = vrot.lane.b32.xlu0 %v314, 126
        %v316 = vpop.permute.xlu0 %315
        %317 = vrot.lane.b32.xlu0 %v310, 126
        %v318 = vpop.permute.xlu0 %317
        %vm319 = vcmask 1031168
        %v320 = vsel %vm319, %v316, %v318
        %324 = vrot.lane.b32.xlu0 %v307, 124
        %v325 = vpop.permute.xlu0 %324
        %vm326 = vcmask 1043456
        %v327 = vsel %vm326, %v310, %v320
        %v328 = vsel %vm326, %v312, %v318
        %v329 = vld [vmem:[%s1] sm:$0xff]
        %v330 = vld [vmem:[%s2] sm:$0xff]
        %332 = vset.pattern.permute.xlu0 0
        %333 = vperm.xlu0 %332, %v330
        %v334 = vpop.permute.xlu0 %333
        %338 = vrot.lane.b32.xlu0 %v327, 4
        %v339 = vpop.permute.xlu0 %338
        %340 = vrot.lane.b32.xlu0 %v328, 4
        %v341 = vpop.permute.xlu0 %340
        %342 = vrot.lane.b32.xlu0 %v325, 4
        %v343 = vpop.permute.xlu0 %342
        %vm344 = vcmask 31744
        %v345 = vsel %vm344, %v339, %v341
        %vm347 = vcmask 97280
        %v349 = vsel %vm347, %v329, 0
        %v351 = vsel %vm326, %v343, 0
        %353 = vmatprep.subr.mxu0 0.0
        %354 = vmatpush1.msra.mxu0 0.0
        %355 = vmatprep.subr.mxu0 0.0
        %356 = vmatpush1.msra.mxu0 0.0
        %357 = vmatprep.subr.mxu0 0.0
        %358 = vmatpush1.msra.mxu0 0.0
        %359 = vmatprep.subr.mxu0 0.0
        %360 = vmatpush1.msra.mxu0 0.0
        %361 = vmatprep.subr.mxu0 0.0
        %362 = vmatpush1.msra.mxu0 0.0
        %363 = vmatprep.subr.mxu0 0.0
        %364 = vmatpush1.msra.mxu0 0.0
        %365 = vmatprep.subr.mxu0 0.0
        %366 = vmatpush1.msra.mxu0 0.0
        %367 = vmatprep.subr.mxu0 0.0
        %368 = vmatpush1.msra.mxu0 0.0
        %369 = vmatprep.subr.mxu0 0.0
        %370 = vmatpush1.msra.mxu0 0.0
        %371 = vmatprep.subr.mxu0 0.0
        %372 = vmatpush1.msra.mxu0 0.0
        %373 = vmatprep.subr.mxu0 0.0
        %374 = vmatpush1.msra.mxu0 0.0
        %375 = vmatprep.subr.mxu0 0.0
        %376 = vmatpush1.msra.mxu0 0.0
        %377 = vmatprep.subr.mxu0 0.0
        %378 = vmatpush1.msra.mxu0 0.0
        %379 = vmatprep.subr.mxu0 0.0
        %380 = vmatpush1.msra.mxu0 0.0
        %381 = vmatprep.subr.mxu0 0.0
        %382 = vmatpush1.msra.mxu0 %v351
        %383 = vmatprep.subr.mxu0 0.0
        %384 = vmatpush1.msra.mxu0 %v345
        %385 = vmatprep.subr.mxu0 0.0
        %386 = vmatpush2.msra.mxu0 0.0
        %387 = vmatprep.subr.mxu0 0.0
        %388 = vmatpush2.msra.mxu0 0.0
        %389 = vmatprep.subr.mxu0 0.0
        %390 = vmatpush2.msra.mxu0 0.0
        %391 = vmatprep.subr.mxu0 0.0
        %392 = vmatpush2.msra.mxu0 0.0
        %393 = vmatprep.subr.mxu0 0.0
        %394 = vmatpush2.msra.mxu0 0.0
        %395 = vmatprep.subr.mxu0 0.0
        %396 = vmatpush2.msra.mxu0 0.0
        %397 = vmatprep.subr.mxu0 0.0
        %398 = vmatpush2.msra.mxu0 0.0
        %399 = vmatprep.subr.mxu0 0.0
        %400 = vmatpush2.msra.mxu0 0.0
        %401 = vmatprep.subr.mxu0 0.0
        %402 = vmatpush2.msra.mxu0 0.0
        %403 = vmatprep.subr.mxu0 0.0
        %404 = vmatpush2.msra.mxu0 0.0
        %405 = vmatprep.subr.mxu0 0.0
        %406 = vmatpush2.msra.mxu0 0.0
        %407 = vmatprep.subr.mxu0 0.0
        %408 = vmatpush2.msra.mxu0 0.0
        %409 = vmatprep.subr.mxu0 0.0
        %410 = vmatpush2.msra.mxu0 0.0
        %411 = vmatprep.subr.mxu0 0.0
        %412 = vmatpush2.msra.mxu0 0.0
        %413 = vmatprep.subr.mxu0 0.0
        %414 = vmatpush2.msra.mxu0 0.0
        %415 = vmatprep.subr.mxu0 0.0
        %416 = vmatpush2.msra.mxu0 0.0
        %417 = vmatprep.mubr.f32.mxu0 0.0
        %418 = vmatmul.mubr.f32.gmra.mxu0 %v349
        %v419 = vpop.f32.mrf.mxu0
        %v420 = vadd.f32 %v334, %v419
        %v421 = vpop.f32.mrf.mxu0
        %422 = vdwg.mxu0
        %v423 = vmax.f32 %v420, 0.0
        %vm424 = vcmask 130048
        %425 = vst.msk [vmem:[#allocation3 + $0x8] sm:$0xff] %vm424, %v423
        %v426 = vld [vmem:[#allocation3] sm:$0xff]
        %v427 = vld [vmem:[#allocation3 + $0x8] sm:$0xff]
        %430 = vrot.lane.b32.xlu0 %v426, 126
        %v431 = vpop.permute.xlu0 %430
        %432 = vrot.lane.b32.xlu0 %v427, 126
        %v433 = vpop.permute.xlu0 %432
        %v434 = vsel %vm319, %v431, %v433
        %436 = vrot.lane.b32.xlu0 %v423, 124
        %v437 = vpop.permute.xlu0 %436
        %v438 = vld [vmem:[%s3] sm:$0xff]
        %v439 = vld [vmem:[%s4] sm:$0xff]
        %441 = vset.pattern.permute.xlu0 0
        %442 = vperm.xlu0 %441, %v439
        %v443 = vpop.permute.xlu0 %442
        %445 = vrot.lane.b32.xlu0 %v426, 4
        %v446 = vpop.permute.xlu0 %445
        %447 = vrot.lane.b32.xlu0 %v427, 4
        %v448 = vpop.permute.xlu0 %447
        %449 = vrot.lane.b32.xlu0 %v434, 4
        %v450 = vpop.permute.xlu0 %449
        %451 = vrot.lane.b32.xlu0 %v433, 4
        %v452 = vpop.permute.xlu0 %451
        %453 = vrot.lane.b32.xlu0 %v437, 4
        %v454 = vpop.permute.xlu0 %453
        %v455 = vsel %vm344, %v446, %v448
        %v456 = vsel %vm344, %v450, %v452
        %vm460 = vcmask 195584
        %v462 = vsel %vm460, %v438, 0
        %464 = vmatprep.subr.mxu0 0.0
        %465 = vmatpush1.msra.mxu0 0.0
        %466 = vmatprep.subr.mxu0 0.0
        %467 = vmatpush1.msra.mxu0 0.0
        %468 = vmatprep.subr.mxu0 0.0
        %469 = vmatpush1.msra.mxu0 0.0
        %470 = vmatprep.subr.mxu0 0.0
        %471 = vmatpush1.msra.mxu0 0.0
        %472 = vmatprep.subr.mxu0 0.0
        %473 = vmatpush1.msra.mxu0 0.0
        %474 = vmatprep.subr.mxu0 0.0
        %475 = vmatpush1.msra.mxu0 0.0
        %476 = vmatprep.subr.mxu0 0.0
        %477 = vmatpush1.msra.mxu0 0.0
        %478 = vmatprep.subr.mxu0 0.0
        %479 = vmatpush1.msra.mxu0 0.0
        %480 = vmatprep.subr.mxu0 0.0
        %481 = vmatpush1.msra.mxu0 0.0
        %482 = vmatprep.subr.mxu0 0.0
        %483 = vmatpush1.msra.mxu0 0.0
        %484 = vmatprep.subr.mxu0 0.0
        %485 = vmatpush1.msra.mxu0 0.0
        %486 = vmatprep.subr.mxu0 0.0
        %487 = vmatpush1.msra.mxu0 0.0
        %488 = vmatprep.subr.mxu0 0.0
        %489 = vmatpush1.msra.mxu0 0.0
        %490 = vmatprep.subr.mxu0 0.0
        %491 = vmatpush1.msra.mxu0 %v454
        %492 = vmatprep.subr.mxu0 0.0
        %493 = vmatpush1.msra.mxu0 %v456
        %494 = vmatprep.subr.mxu0 0.0
        %495 = vmatpush1.msra.mxu0 %v455
        %496 = vmatprep.subr.mxu0 0.0
        %497 = vmatpush2.msra.mxu0 0.0
        %498 = vmatprep.subr.mxu0 0.0
        %499 = vmatpush2.msra.mxu0 0.0
        %500 = vmatprep.subr.mxu0 0.0
        %501 = vmatpush2.msra.mxu0 0.0
        %502 = vmatprep.subr.mxu0 0.0
        %503 = vmatpush2.msra.mxu0 0.0
        %504 = vmatprep.subr.mxu0 0.0
        %505 = vmatpush2.msra.mxu0 0.0
        %506 = vmatprep.subr.mxu0 0.0
        %507 = vmatpush2.msra.mxu0 0.0
        %508 = vmatprep.subr.mxu0 0.0
        %509 = vmatpush2.msra.mxu0 0.0
        %510 = vmatprep.subr.mxu0 0.0
        %511 = vmatpush2.msra.mxu0 0.0
        %512 = vmatprep.subr.mxu0 0.0
        %513 = vmatpush2.msra.mxu0 0.0
        %514 = vmatprep.subr.mxu0 0.0
        %515 = vmatpush2.msra.mxu0 0.0
        %516 = vmatprep.subr.mxu0 0.0
        %517 = vmatpush2.msra.mxu0 0.0
        %518 = vmatprep.subr.mxu0 0.0
        %519 = vmatpush2.msra.mxu0 0.0
        %520 = vmatprep.subr.mxu0 0.0
        %521 = vmatpush2.msra.mxu0 0.0
        %522 = vmatprep.subr.mxu0 0.0
        %523 = vmatpush2.msra.mxu0 0.0
        %524 = vmatprep.subr.mxu0 0.0
        %525 = vmatpush2.msra.mxu0 0.0
        %526 = vmatprep.subr.mxu0 0.0
        %527 = vmatpush2.msra.mxu0 0.0
        %528 = vmatprep.mubr.f32.mxu0 0.0
        %529 = vmatmul.mubr.f32.gmra.mxu0 %v462
        %v530 = vpop.f32.mrf.mxu0
        %v531 = vadd.f32 %v443, %v530
        %v532 = vpop.f32.mrf.mxu0
        %533 = vdwg.mxu0
        %v534 = vmax.f32 %v531, 0.0
        %v535 = vld [vmem:[%s5] sm:$0xff]
        %v536 = vld [vmem:[%s6] sm:$0xff]
        %538 = vset.pattern.permute.xlu0 0
        %539 = vperm.xlu0 %538, %v536
        %v540 = vpop.permute.xlu0 %539
        %v543 = vsel %vm344, %v535, 0
        %v545 = vsel %vm326, %v307, 0
        %547 = vmatprep.subr.mxu0 0.0
        %548 = vmatpush1.msra.mxu0 0.0
        %549 = vmatprep.subr.mxu0 0.0
        %550 = vmatpush1.msra.mxu0 0.0
        %551 = vmatprep.subr.mxu0 0.0
        %552 = vmatpush1.msra.mxu0 0.0
        %553 = vmatprep.subr.mxu0 0.0
        %554 = vmatpush1.msra.mxu0 0.0
        %555 = vmatprep.subr.mxu0 0.0
        %556 = vmatpush1.msra.mxu0 0.0
        %557 = vmatprep.subr.mxu0 0.0
        %558 = vmatpush1.msra.mxu0 0.0
        %559 = vmatprep.subr.mxu0 0.0
        %560 = vmatpush1.msra.mxu0 0.0
        %561 = vmatprep.subr.mxu0 0.0
        %562 = vmatpush1.msra.mxu0 0.0
        %563 = vmatprep.subr.mxu0 0.0
        %564 = vmatpush1.msra.mxu0 0.0
        %565 = vmatprep.subr.mxu0 0.0
        %566 = vmatpush1.msra.mxu0 0.0
        %567 = vmatprep.subr.mxu0 0.0
        %568 = vmatpush1.msra.mxu0 0.0
        %569 = vmatprep.subr.mxu0 0.0
        %570 = vmatpush1.msra.mxu0 0.0
        %571 = vmatprep.subr.mxu0 0.0
        %572 = vmatpush1.msra.mxu0 0.0
        %573 = vmatprep.subr.mxu0 0.0
        %574 = vmatpush1.msra.mxu0 0.0
        %575 = vmatprep.subr.mxu0 0.0
        %576 = vmatpush1.msra.mxu0 0.0
        %577 = vmatprep.subr.mxu0 0.0
        %578 = vmatpush1.msra.mxu0 %v545
        %579 = vmatprep.subr.mxu0 0.0
        %580 = vmatpush2.msra.mxu0 0.0
        %581 = vmatprep.subr.mxu0 0.0
        %582 = vmatpush2.msra.mxu0 0.0
        %583 = vmatprep.subr.mxu0 0.0
        %584 = vmatpush2.msra.mxu0 0.0
        %585 = vmatprep.subr.mxu0 0.0
        %586 = vmatpush2.msra.mxu0 0.0
        %587 = vmatprep.subr.mxu0 0.0
        %588 = vmatpush2.msra.mxu0 0.0
        %589 = vmatprep.subr.mxu0 0.0
        %590 = vmatpush2.msra.mxu0 0.0
        %591 = vmatprep.subr.mxu0 0.0
        %592 = vmatpush2.msra.mxu0 0.0
        %593 = vmatprep.subr.mxu0 0.0
        %594 = vmatpush2.msra.mxu0 0.0
        %595 = vmatprep.subr.mxu0 0.0
        %596 = vmatpush2.msra.mxu0 0.0
        %597 = vmatprep.subr.mxu0 0.0
        %598 = vmatpush2.msra.mxu0 0.0
        %599 = vmatprep.subr.mxu0 0.0
        %600 = vmatpush2.msra.mxu0 0.0
        %601 = vmatprep.subr.mxu0 0.0
        %602 = vmatpush2.msra.mxu0 0.0
        %603 = vmatprep.subr.mxu0 0.0
        %604 = vmatpush2.msra.mxu0 0.0
        %605 = vmatprep.subr.mxu0 0.0
        %606 = vmatpush2.msra.mxu0 0.0
        %607 = vmatprep.subr.mxu0 0.0
        %608 = vmatpush2.msra.mxu0 0.0
        %609 = vmatprep.subr.mxu0 0.0
        %610 = vmatpush2.msra.mxu0 0.0
        %611 = vmatprep.mubr.f32.mxu0 0.0
        %612 = vmatmul.mubr.f32.gmra.mxu0 %v543
        %v613 = vpop.f32.mrf.mxu0
        %v614 = vadd.f32 %v540, %v613
        %v615 = vpop.f32.mrf.mxu0
        %616 = vdwg.mxu0
        %v617 = vadd.f32 %v534, %v614
        %v618 = vmax.f32 %v617, 0.0
        %619 = vst.msk [vmem:[%s291] sm:$0xff] %vm424, %v618
        %s620 = sand.u32 %s197, 1
        %s621 = scalar_lea.sflag [#allocation5], %s620
        %s622 = sand.u32 %s197, 1
        %s623 = smul.addr %s622, 8
        %s624 = scalar_lea.vmem [#allocation4], %s623
        // Predicated region
        $region53: #{tpu_custom_call.1} parent=47 // pred_check
          %p625 = pneg %p207
        $region54: #{tpu_custom_call.1} parent=47 // pred_check_branch
          %627 = sbr.rel (%p625) target = $region56
        $region55: #{tpu_custom_call.1} parent=47 // pred_region
          %s629 = ssub.s32 128, 128
          %630 = vsyncadd %s621, %s629
          %s631 = sadd.s32 %s26, %s25
          %s632 = smul.addr %s631, 128
          %s633 = scalar_lea.hbm %s7, %s632
          %s635 = sshll.u32 %s624, 4
          %s636 = int_to_ptr.vmem [resolvable:$true] %s635
          %638 = dma.vmem_to_hbm [thread:$0]  %s636, 128, %s633, %s621
        $region56: #{tpu_custom_call.1} parent=47 // pred_fallthru
          _
      $region48: #{tpu_custom_call.1} parent=5 // pred_fallthru
        _
      %p639 = scmp.le.s32.totalorder 2, %s16
      // Predicated region
      $region57: #{tpu_custom_call.1} parent=5 // pred_check
        %p640 = pneg %p639
      $region58: #{tpu_custom_call.1} parent=5 // pred_check_branch
        %642 = sbr.rel (%p640) target = $region60
      $region59: #{tpu_custom_call.1} parent=5 // pred_region
        %s643 = ssub.s32 %s16, 2
        // Predicated region
        $region61: #{tpu_custom_call.1} parent=59 // pred_check
          %p644 = pneg %p213
        $region62: #{tpu_custom_call.1} parent=59 // pred_check_branch
          %646 = sbr.rel (%p644) target = $region64
        $region63: #{tpu_custom_call.1} parent=59 // pred_region
          %s647 = sand.u32 %s198, 1
          %s648 = scalar_lea.sflag [#allocation5], %s647
          %s649 = sand.u32 %s198, 1
          %s650 = smul.addr %s649, 8
          %s651 = scalar_lea.vmem [#allocation4], %s650
          %652 = dma.done %s648, 128
        $region64: #{tpu_custom_call.1} parent=59 // pred_fallthru
          _
      $region60: #{tpu_custom_call.1} parent=5 // pred_fallthru
        _
    $region6: #{tpu_custom_call.1} parent=1 // loop_footer
      %s20 = sadd.s32 1, %s16
    $region7: #{tpu_custom_call.1} parent=1 // loop_footer_branch
      %15 = sbr.rel target = $region3
    $region8: #{tpu_custom_call.1} parent=1 // loop_exit
      _
    %653 = vsyncpa [#allocation5], 1
    %s654 = scalar_lea.sflag [#allocation5], 1
    %655 = vsyncpa %s654, 1

// kernel: tpu_custom_call.1
$region0: #{tpu_custom_call.1}
  #allocation0 [shape = 'u32[]', space=smem, size = 0x4, offset = 0x4, fixed_abs, tag = 'smem constant byte address 0x4 - core index']
  #allocation1 [shape = 'u32[144,128]{1,0:T(1,128)}', space=vmem, size = 0x12000, scoped, tag = 'internal scratch']
  #allocation2 [shape = 'f32[4,144]{1,0:T(4,128)}', space=vmem, size = 0x1000, scoped, tag = 'scratch operand']
  #allocation3 [shape = 'f32[8,144]{1,0:T(8,128)}', space=vmem, size = 0x2000, scoped, tag = 'scratch operand']
  %s0 = inlined_call_operand.vmem [shape: f32[2,4,16], index: 0, kind: input, shape index: {}]
  %s1 = inlined_call_operand.vmem [shape: f32[8,12], index: 1, kind: input, shape index: {}]
  %s2 = inlined_call_operand.vmem [shape: f32[8,1], index: 2, kind: input, shape index: {}]
  %s3 = inlined_call_operand.vmem [shape: f32[8,24], index: 3, kind: input, shape index: {}]
  %s4 = inlined_call_operand.vmem [shape: f32[8,1], index: 4, kind: input, shape index: {}]
  %s5 = inlined_call_operand.vmem [shape: f32[8,4], index: 5, kind: input, shape index: {}]
  %s6 = inlined_call_operand.vmem [shape: f32[8,1], index: 6, kind: input, shape index: {}]
  %s7 = inlined_call_operand.hbm [shape: f32[2,8,16], index: 7, kind: output, shape index: {}]
  %s8 = sld [smem:[#allocation0]]
  $region65: #{tpu_custom_call.1} parent=0
    _
  %s10 = ssub.s32 1, %s8
  %s11 = scalar_select 0, %s10, %s8
  $region1: #{tpu_custom_call.1} parent=0
    #allocation4 [shape = 'u8[8192]{0}', space=vmem, size = 0x2000, scoped, tag = 'output window, operand 0']
    #allocation5 [shape = 's32[2]{0}', space=sflag, size = 0x8, scoped, tag = 'scoped memory for tpu_custom_call.1']
    %12 = vsyncpa [#allocation5], 0
    %s13 = scalar_lea.sflag [#allocation5], 1
    %14 = vsyncpa %s13, 0
    loop: start=0, step=1, limit=4
    $region2: #{tpu_custom_call.1} parent=1 // loop_pre_header
      _
    $region3: #{tpu_custom_call.1} parent=1 // loop_header
      %s16 = sphi 0, %s20
      %p17 = scmp.ge.s32.totalorder %s16, 4
      %s23 = sphi 0, %s35
      %s24 = sphi 0, %s31
      %s25 = sphi 0, %s23
      %s26 = sphi 0, %s24
      %s27 = sphi 0, %s25
      %s28 = sphi 0, %s26
      %s40 = sphi 0, %s42
      %s43 = sphi 0, %s40
      %s44 = sphi 0, %s43
      %s60 = sphi 0, %s44
      %s64 = sphi 0, %s64
      %s66 = sphi 0, %s64
      %s67 = sphi 0, %s66
      %s81 = sphi 0, %s67
      %s85 = sphi 0, %s85
      %s87 = sphi 0, %s85
      %s88 = sphi 0, %s87
      %s102 = sphi 0, %s88
      %s106 = sphi 0, %s106
      %s108 = sphi 0, %s106
      %s109 = sphi 0, %s108
      %s123 = sphi 0, %s109
      %s127 = sphi 0, %s127
      %s129 = sphi 0, %s127
      %s130 = sphi 0, %s129
      %s144 = sphi 0, %s130
      %s148 = sphi 0, %s148
      %s150 = sphi 0, %s148
      %s151 = sphi 0, %s150
      %s165 = sphi 0, %s151
      %s169 = sphi 0, %s169
      %s171 = sphi 0, %s169
      %s172 = sphi 0, %s171
      %s186 = sphi 0, %s172
      %s194 = sphi 0, %s196
      %s197 = sphi 0, %s194
      %s198 = sphi 0, %s197
      %s214 = sphi 0, %s198
    $region4: #{tpu_custom_call.1} parent=1 // loop_header_branch
      %19 = sbr.rel (%p17) target = $region8
    $region5: #{tpu_custom_call.1} parent=1 // loop_body
      %s21 = ssub.s32 %s16, 1
      %s22 = ssub.s32 %s16, 2
      %s29 = sadd.s32 1, %s24
      %p30 = scmp.ge.s32.totalorder %s29, 1
      %s31 = scalar_select %p30, 0, %s29
      %s32 = sadd.s32 1, %s23
      %s33 = scalar_select %p30, %s32, %s23
      %p34 = scmp.ge.s32.totalorder %s33, 2
      %s35 = scalar_select %p34, 0, %s33
      %s36 = ssub.s32 %s23, %s35
      %s37 = ssub.s32 %s24, %s31
      %s38 = sor.u32 %s36, %s37
      %p39 = scmp.eq.s32.totalorder %s38, 0
      %s41 = sadd.s32 %s40, 1
      %s42 = scalar_select %p39, %s40, %s41
      %p45 = pneg %p39
      %p46 = scmp.eq.s32.totalorder %s16, 1
      %p47 = por %p45, %p46
      %p48 = scmp.ne.s32.totalorder %s40, %s43
      %p49 = scmp.eq.s32.totalorder %s16, 0
      %p50 = por %p48, %p49
      %p51 = scmp.ne.s32.totalorder %s40, %s43
      %p52 = scmp.eq.s32.totalorder %s21, 1
      %p53 = por %p51, %p52
      %p54 = scmp.ne.s32.totalorder %s43, %s44
      %p55 = scmp.eq.s32.totalorder %s21, 0
      %p56 = por %p54, %p55
      %p57 = scmp.ne.s32.totalorder %s43, %s44
      %p58 = scmp.eq.s32.totalorder %s22, 1
      %p59 = por %p57, %p58
      %p61 = scmp.ne.s32.totalorder %s44, %s60
      %p62 = scmp.eq.s32.totalorder %s22, 0
      %p63 = por %p61, %p62
      %s65 = sadd.s32 %s64, 1
      %p68 = scmp.eq.s32.totalorder %s16, 1
      %p69 = scmp.ne.s32.totalorder %s64, %s66
      %p70 = scmp.eq.s32.totalorder %s16, 0
      %p71 = por %p69, %p70
      %p72 = scmp.ne.s32.totalorder %s64, %s66
      %p73 = scmp.eq.s32.totalorder %s21, 1
      %p74 = por %p72, %p73
      %p75 = scmp.ne.s32.totalorder %s66, %s67
      %p76 = scmp.eq.s32.totalorder %s21, 0
      %p77 = por %p75, %p76
      %p78 = scmp.ne.s32.totalorder %s66, %s67
      %p79 = scmp.eq.s32.totalorder %s22, 1
      %p80 = por %p78, %p79
      %p82 = scmp.ne.s32.totalorder %s67, %s81
      %p83 = scmp.eq.s32.totalorder %s22, 0
      %p84 = por %p82, %p83
      %s86 = sadd.s32 %s85, 1
      %p89 = scmp.eq.s32.totalorder %s16, 1
      %p90 = scmp.ne.s32.totalorder %s85, %s87
      %p91 = scmp.eq.s32.totalorder %s16, 0
      %p92 = por %p90, %p91
      %p93 = scmp.ne.s32.totalorder %s85, %s87
      %p94 = scmp.eq.s32.totalorder %s21, 1
      %p95 = por %p93, %p94
      %p96 = scmp.ne.s32.totalorder %s87, %s88
      %p97 = scmp.eq.s32.totalorder %s21, 0
      %p98 = por %p96, %p97
      %p99 = scmp.ne.s32.totalorder %s87, %s88
      %p100 = scmp.eq.s32.totalorder %s22, 1
      %p101 = por %p99, %p100
      %p103 = scmp.ne.s32.totalorder %s88, %s102
      %p104 = scmp.eq.s32.totalorder %s22, 0
      %p105 = por %p103, %p104
      %s107 = sadd.s32 %s106, 1
      %p110 = scmp.eq.s32.totalorder %s16, 1
      %p111 = scmp.ne.s32.totalorder %s106, %s108
      %p112 = scmp.eq.s32.totalorder %s16, 0
      %p113 = por %p111, %p112
      %p114 = scmp.ne.s32.totalorder %s106, %s108
      %p115 = scmp.eq.s32.totalorder %s21, 1
      %p116 = por %p114, %p115
      %p117 = scmp.ne.s32.totalorder %s108, %s109
      %p118 = scmp.eq.s32.totalorder %s21, 0
      %p119 = por %p117, %p118
      %p120 = scmp.ne.s32.totalorder %s108, %s109
      %p121 = scmp.eq.s32.totalorder %s22, 1
      %p122 = por %p120, %p121
      %p124 = scmp.ne.s32.totalorder %s109, %s123
      %p125 = scmp.eq.s32.totalorder %s22, 0
      %p126 = por %p124, %p125
      %s128 = sadd.s32 %s127, 1
      %p131 = scmp.eq.s32.totalorder %s16, 1
      %p132 = scmp.ne.s32.totalorder %s127, %s129
      %p133 = scmp.eq.s32.totalorder %s16, 0
      %p134 = por %p132, %p133
      %p135 = scmp.ne.s32.totalorder %s127, %s129
      %p136 = scmp.eq.s32.totalorder %s21, 1
      %p137 = por %p135, %p136
      %p138 = scmp.ne.s32.totalorder %s129, %s130
      %p139 = scmp.eq.s32.totalorder %s21, 0
      %p140 = por %p138, %p139
      %p141 = scmp.ne.s32.totalorder %s129, %s130
      %p142 = scmp.eq.s32.totalorder %s22, 1
      %p143 = por %p141, %p142
      %p145 = scmp.ne.s32.totalorder %s130, %s144
      %p146 = scmp.eq.s32.totalorder %s22, 0
      %p147 = por %p145, %p146
      %s149 = sadd.s32 %s148, 1
      %p152 = scmp.eq.s32.totalorder %s16, 1
      %p153 = scmp.ne.s32.totalorder %s148, %s150
      %p154 = scmp.eq.s32.totalorder %s16, 0
      %p155 = por %p153, %p154
      %p156 = scmp.ne.s32.totalorder %s148, %s150
      %p157 = scmp.eq.s32.totalorder %s21, 1
      %p158 = por %p156, %p157
      %p159 = scmp.ne.s32.totalorder %s150, %s151
      %p160 = scmp.eq.s32.totalorder %s21, 0
      %p161 = por %p159, %p160
      %p162 = scmp.ne.s32.totalorder %s150, %s151
      %p163 = scmp.eq.s32.totalorder %s22, 1
      %p164 = por %p162, %p163
      %p166 = scmp.ne.s32.totalorder %s151, %s165
      %p167 = scmp.eq.s32.totalorder %s22, 0
      %p168 = por %p166, %p167
      %s170 = sadd.s32 %s169, 1
      %p173 = scmp.eq.s32.totalorder %s16, 1
      %p174 = scmp.ne.s32.totalorder %s169, %s171
      %p175 = scmp.eq.s32.totalorder %s16, 0
      %p176 = por %p174, %p175
      %p177 = scmp.ne.s32.totalorder %s169, %s171
      %p178 = scmp.eq.s32.totalorder %s21, 1
      %p179 = por %p177, %p178
      %p180 = scmp.ne.s32.totalorder %s171, %s172
      %p181 = scmp.eq.s32.totalorder %s21, 0
      %p182 = por %p180, %p181
      %p183 = scmp.ne.s32.totalorder %s171, %s172
      %p184 = scmp.eq.s32.totalorder %s22, 1
      %p185 = por %p183, %p184
      %p187 = scmp.ne.s32.totalorder %s172, %s186
      %p188 = scmp.eq.s32.totalorder %s22, 0
      %p189 = por %p187, %p188
      %s190 = ssub.s32 %s23, %s35
      %s191 = ssub.s32 %s24, %s31
      %s192 = sor.u32 %s190, %s191
      %p193 = scmp.eq.s32.totalorder %s192, 0
      %s195 = sadd.s32 %s194, 1
      %s196 = scalar_select %p193, %s194, %s195
      %p199 = pneg %p193
      %p200 = scmp.eq.s32.totalorder %s16, 1
      %p201 = por %p199, %p200
      %p202 = scmp.ne.s32.totalorder %s194, %s197
      %p203 = scmp.eq.s32.totalorder %s16, 0
      %p204 = por %p202, %p203
      %p205 = scmp.ne.s32.totalorder %s194, %s197
      %p206 = scmp.eq.s32.totalorder %s21, 1
      %p207 = por %p205, %p206
      %p208 = scmp.ne.s32.totalorder %s197, %s198
      %p209 = scmp.eq.s32.totalorder %s21, 0
      %p210 = por %p208, %p209
      %p211 = scmp.ne.s32.totalorder %s197, %s198
      %p212 = scmp.eq.s32.totalorder %s22, 1
      %p213 = por %p211, %p212
      %p215 = scmp.ne.s32.totalorder %s198, %s214
      %p216 = scmp.eq.s32.totalorder %s22, 0
      %p217 = por %p215, %p216
      %p218 = scmp.le.s32.totalorder 1, %s16
      %p219 = scmp.lt.s32.totalorder %s16, 3
      %p220 = pnand %p218, %p219
      %p221 = pneg %p220
      // Predicated region
      $region9: #{tpu_custom_call.1} parent=5 // pred_check
        _
      $region10: #{tpu_custom_call.1} parent=5 // pred_check_branch
        %223 = sbr.rel (%p220) target = $region12
      $region11: #{tpu_custom_call.1} parent=5 // pred_region
        %s224 = ssub.s32 %s16, 1
        // Predicated region
        $region13: #{tpu_custom_call.1} parent=11 // pred_check
          %p225 = pneg %p77
        $region14: #{tpu_custom_call.1} parent=11 // pred_check_branch
          %227 = sbr.rel (%p225) target = $region16
        $region15: #{tpu_custom_call.1} parent=11 // pred_region
          _
        $region16: #{tpu_custom_call.1} parent=11 // pred_fallthru
          _
        // Predicated region
        $region17: #{tpu_custom_call.1} parent=11 // pred_check
          %p228 = pneg %p98
        $region18: #{tpu_custom_call.1} parent=11 // pred_check_branch
          %230 = sbr.rel (%p228) target = $region20
        $region19: #{tpu_custom_call.1} parent=11 // pred_region
          _
        $region20: #{tpu_custom_call.1} parent=11 // pred_fallthru
          _
        // Predicated region
        $region21: #{tpu_custom_call.1} parent=11 // pred_check
          %p231 = pneg %p119
        $region22: #{tpu_custom_call.1} parent=11 // pred_check_branch
          %233 = sbr.rel (%p231) target = $region24
        $region23: #{tpu_custom_call.1} parent=11 // pred_region
          _
        $region24: #{tpu_custom_call.1} parent=11 // pred_fallthru
          _
        // Predicated region
        $region25: #{tpu_custom_call.1} parent=11 // pred_check
          %p234 = pneg %p140
        $region26: #{tpu_custom_call.1} parent=11 // pred_check_branch
          %236 = sbr.rel (%p234) target = $region28
        $region27: #{tpu_custom_call.1} parent=11 // pred_region
          _
        $region28: #{tpu_custom_call.1} parent=11 // pred_fallthru
          _
        // Predicated region
        $region29: #{tpu_custom_call.1} parent=11 // pred_check
          %p237 = pneg %p161
        $region30: #{tpu_custom_call.1} parent=11 // pred_check_branch
          %239 = sbr.rel (%p237) target = $region32
        $region31: #{tpu_custom_call.1} parent=11 // pred_region
          _
        $region32: #{tpu_custom_call.1} parent=11 // pred_fallthru
          _
        // Predicated region
        $region33: #{tpu_custom_call.1} parent=11 // pred_check
          %p240 = pneg %p182
        $region34: #{tpu_custom_call.1} parent=11 // pred_check_branch
          %242 = sbr.rel (%p240) target = $region36
        $region35: #{tpu_custom_call.1} parent=11 // pred_region
          _
        $region36: #{tpu_custom_call.1} parent=11 // pred_fallthru
          _
      $region12: #{tpu_custom_call.1} parent=5 // pred_fallthru
        _
      %p243 = scmp.lt.s32.totalorder %s16, 2
      // Predicated region
      $region37: #{tpu_custom_call.1} parent=5 // pred_check
        %p244 = pneg %p243
      $region38: #{tpu_custom_call.1} parent=5 // pred_check_branch
        %246 = sbr.rel (%p244) target = $region40
      $region39: #{tpu_custom_call.1} parent=5 // pred_region
        // Predicated region
        $region41: #{tpu_custom_call.1} parent=39 // pred_check
          %p247 = pneg %p50
        $region42: #{tpu_custom_call.1} parent=39 // pred_check_branch
          %249 = sbr.rel (%p247) target = $region44
        $region43: #{tpu_custom_call.1} parent=39 // pred_region
          %p250 = scmp.lt.s32.totalorder %s23, 1
          %s251 = scalar_select %p250, %s23, 1
          %p252 = scmp.lt.s32.totalorder %s24, 0
          %s253 = scalar_select %p252, %s24, 0
          %s254 = sadd.s32 %s253, %s251
          %s255 = smul.addr %s254, 4
          %s256 = scalar_lea.vmem %s0, %s255
        $region44: #{tpu_custom_call.1} parent=39 // pred_fallthru
          _
      $region40: #{tpu_custom_call.1} parent=5 // pred_fallthru
        _
      %p257 = scmp.le.s32.totalorder 1, %s16
      %p258 = scmp.lt.s32.totalorder %s16, 3
      %p259 = pnand %p257, %p258
      %p260 = pneg %p259
      // Predicated region
      $region45: #{tpu_custom_call.1} parent=5 // pred_check
        _
      $region46: #{tpu_custom_call.1} parent=5 // pred_check_branch
        %262 = sbr.rel (%p259) target = $region48
      $region47: #{tpu_custom_call.1} parent=5 // pred_region
        %s263 = ssub.s32 %s16, 1
        %p264 = scmp.lt.s32.totalorder %s25, 1
        %s265 = scalar_select %p264, %s25, 1
        %p266 = scmp.lt.s32.totalorder %s26, 0
        %s267 = scalar_select %p266, %s26, 0
        %s268 = sadd.s32 %s267, %s265
        %s269 = smul.addr %s268, 4
        %s270 = scalar_lea.vmem %s0, %s269
        %p271 = pneg %p56
        %p272 = pneg %p53
        %p273 = pneg %p77
        %p274 = pneg %p74
        %p275 = pneg %p98
        %p276 = pneg %p95
        %p277 = pneg %p119
        %p278 = pneg %p116
        %p279 = pneg %p140
        %p280 = pneg %p137
        %p281 = pneg %p161
        %p282 = pneg %p158
        %p283 = pneg %p182
        %p284 = pneg %p179
        %p285 = pneg %p210
        %p286 = pneg %p207
        %s287 = sand.u32 %s197, 1
        %s288 = scalar_lea.sflag [#allocation5], %s287
        %s289 = sand.u32 %s197, 1
        %s290 = smul.addr %s289, 8
        %s291 = scalar_lea.vmem [#allocation4], %s290
        %p292 = scmp.lt.s32.totalorder %s25, 1
        %s293 = scalar_select %p292, %s25, 1
        %p294 = scmp.lt.s32.totalorder %s26, 0
        %s295 = scalar_select %p294, %s26, 0
        %s296 = sadd.s32 %s295, %s293
        %s297 = smul.addr %s296, 4
        %s298 = scalar_lea.vmem %s0, %s297
        %p299 = scmp.eq.s32.totalorder %s26, 0
        // Predicated region
        $region49: #{tpu_custom_call.1} parent=47 // pred_check
          %p300 = pneg %p299
        $region50: #{tpu_custom_call.1} parent=47 // pred_check_branch
          %302 = sbr.rel (%p300) target = $region52
        $region51: #{tpu_custom_call.1} parent=47 // pred_region
          %vm303 = vcmask 1044448
          %304 = vst.msk [vmem:[#allocation2] sm:$0xf] %vm303, 0.0
          %vm305 = vcmask 1048544
          %306 = vst.msk [vmem:[#allocation3] sm:$0xff] %vm305, 0.0
        $region52: #{tpu_custom_call.1} parent=47 // pred_fallthru
          _
        %v307 = vld [vmem:[%s298] sm:$0xf]
        %vm308 = vcmask 125952
        %309 = vst.msk [vmem:[#allocation2 + $0x4] sm:$0xf] %vm308, %v307
        %v310 = vld [vmem:[#allocation2] sm:$0xff]
        %v312 = vcombine.high %v310, %v310
        %v314 = vcombine.low %v310, %v310
        %315 = vrot.lane.b32.xlu0 %v314, 126
        %v316 = vpop.permute.xlu0 %315
        %317 = vrot.lane.b32.xlu0 %v310, 126
        %v318 = vpop.permute.xlu0 %317
        %vm319 = vcmask 1031168
        %v320 = vsel %vm319, %v316, %v318
        %324 = vrot.lane.b32.xlu0 %v307, 124
        %v325 = vpop.permute.xlu0 %324
        %vm326 = vcmask 1043456
        %v327 = vsel %vm326, %v310, %v320
        %v328 = vsel %vm326, %v312, %v318
        %v329 = vld [vmem:[%s1] sm:$0xff]
        %v330 = vld [vmem:[%s2] sm:$0xff]
        %332 = vset.pattern.permute.xlu0 0
        %333 = vperm.xlu0 %332, %v330
        %v334 = vpop.permute.xlu0 %333
        %338 = vrot.lane.b32.xlu0 %v327, 4
        %v339 = vpop.permute.xlu0 %338
        %340 = vrot.lane.b32.xlu0 %v328, 4
        %v341 = vpop.permute.xlu0 %340
        %342 = vrot.lane.b32.xlu0 %v325, 4
        %v343 = vpop.permute.xlu0 %342
        %vm344 = vcmask 31744
        %v345 = vsel %vm344, %v339, %v341
        %vm347 = vcmask 97280
        %v349 = vsel %vm347, %v329, 0
        %v351 = vsel %vm326, %v343, 0
        %353 = vmatprep.subr.mxu0 0.0
        %354 = vmatpush1.msra.mxu0 0.0
        %355 = vmatprep.subr.mxu0 0.0
        %356 = vmatpush1.msra.mxu0 0.0
        %357 = vmatprep.subr.mxu0 0.0
        %358 = vmatpush1.msra.mxu0 0.0
        %359 = vmatprep.subr.mxu0 0.0
        %360 = vmatpush1.msra.mxu0 0.0
        %361 = vmatprep.subr.mxu0 0.0
        %362 = vmatpush1.msra.mxu0 0.0
        %363 = vmatprep.subr.mxu0 0.0
        %364 = vmatpush1.msra.mxu0 0.0
        %365 = vmatprep.subr.mxu0 0.0
        %366 = vmatpush1.msra.mxu0 0.0
        %367 = vmatprep.subr.mxu0 0.0
        %368 = vmatpush1.msra.mxu0 0.0
        %369 = vmatprep.subr.mxu0 0.0
        %370 = vmatpush1.msra.mxu0 0.0
        %371 = vmatprep.subr.mxu0 0.0
        %372 = vmatpush1.msra.mxu0 0.0
        %373 = vmatprep.subr.mxu0 0.0
        %374 = vmatpush1.msra.mxu0 0.0
        %375 = vmatprep.subr.mxu0 0.0
        %376 = vmatpush1.msra.mxu0 0.0
        %377 = vmatprep.subr.mxu0 0.0
        %378 = vmatpush1.msra.mxu0 0.0
        %379 = vmatprep.subr.mxu0 0.0
        %380 = vmatpush1.msra.mxu0 0.0
        %381 = vmatprep.subr.mxu0 0.0
        %382 = vmatpush1.msra.mxu0 %v351
        %383 = vmatprep.subr.mxu0 0.0
        %384 = vmatpush1.msra.mxu0 %v345
        %385 = vmatprep.subr.mxu0 0.0
        %386 = vmatpush2.msra.mxu0 0.0
        %387 = vmatprep.subr.mxu0 0.0
        %388 = vmatpush2.msra.mxu0 0.0
        %389 = vmatprep.subr.mxu0 0.0
        %390 = vmatpush2.msra.mxu0 0.0
        %391 = vmatprep.subr.mxu0 0.0
        %392 = vmatpush2.msra.mxu0 0.0
        %393 = vmatprep.subr.mxu0 0.0
        %394 = vmatpush2.msra.mxu0 0.0
        %395 = vmatprep.subr.mxu0 0.0
        %396 = vmatpush2.msra.mxu0 0.0
        %397 = vmatprep.subr.mxu0 0.0
        %398 = vmatpush2.msra.mxu0 0.0
        %399 = vmatprep.subr.mxu0 0.0
        %400 = vmatpush2.msra.mxu0 0.0
        %401 = vmatprep.subr.mxu0 0.0
        %402 = vmatpush2.msra.mxu0 0.0
        %403 = vmatprep.subr.mxu0 0.0
        %404 = vmatpush2.msra.mxu0 0.0
        %405 = vmatprep.subr.mxu0 0.0
        %406 = vmatpush2.msra.mxu0 0.0
        %407 = vmatprep.subr.mxu0 0.0
        %408 = vmatpush2.msra.mxu0 0.0
        %409 = vmatprep.subr.mxu0 0.0
        %410 = vmatpush2.msra.mxu0 0.0
        %411 = vmatprep.subr.mxu0 0.0
        %412 = vmatpush2.msra.mxu0 0.0
        %413 = vmatprep.subr.mxu0 0.0
        %414 = vmatpush2.msra.mxu0 0.0
        %415 = vmatprep.subr.mxu0 0.0
        %416 = vmatpush2.msra.mxu0 0.0
        %417 = vmatprep.mubr.f32.mxu0 0.0
        %418 = vmatmul.mubr.f32.gmra.mxu0 %v349
        %v419 = vpop.f32.mrf.mxu0
        %v420 = vadd.f32 %v334, %v419
        %v421 = vpop.f32.mrf.mxu0
        %422 = vdwg.mxu0
        %v423 = vmax.f32 %v420, 0.0
        %vm424 = vcmask 130048
        %425 = vst.msk [vmem:[#allocation3 + $0x8] sm:$0xff] %vm424, %v423
        %v426 = vld [vmem:[#allocation3] sm:$0xff]
        %v427 = vld [vmem:[#allocation3 + $0x8] sm:$0xff]
        %430 = vrot.lane.b32.xlu0 %v426, 126
        %v431 = vpop.permute.xlu0 %430
        %432 = vrot.lane.b32.xlu0 %v427, 126
        %v433 = vpop.permute.xlu0 %432
        %v434 = vsel %vm319, %v431, %v433
        %436 = vrot.lane.b32.xlu0 %v423, 124
        %v437 = vpop.permute.xlu0 %436
        %v438 = vld [vmem:[%s3] sm:$0xff]
        %v439 = vld [vmem:[%s4] sm:$0xff]
        %441 = vset.pattern.permute.xlu0 0
        %442 = vperm.xlu0 %441, %v439
        %v443 = vpop.permute.xlu0 %442
        %445 = vrot.lane.b32.xlu0 %v426, 4
        %v446 = vpop.permute.xlu0 %445
        %447 = vrot.lane.b32.xlu0 %v427, 4
        %v448 = vpop.permute.xlu0 %447
        %449 = vrot.lane.b32.xlu0 %v434, 4
        %v450 = vpop.permute.xlu0 %449
        %451 = vrot.lane.b32.xlu0 %v433, 4
        %v452 = vpop.permute.xlu0 %451
        %453 = vrot.lane.b32.xlu0 %v437, 4
        %v454 = vpop.permute.xlu0 %453
        %v455 = vsel %vm344, %v446, %v448
        %v456 = vsel %vm344, %v450, %v452
        %vm460 = vcmask 195584
        %v462 = vsel %vm460, %v438, 0
        %464 = vmatprep.subr.mxu0 0.0
        %465 = vmatpush1.msra.mxu0 0.0
        %466 = vmatprep.subr.mxu0 0.0
        %467 = vmatpush1.msra.mxu0 0.0
        %468 = vmatprep.subr.mxu0 0.0
        %469 = vmatpush1.msra.mxu0 0.0
        %470 = vmatprep.subr.mxu0 0.0
        %471 = vmatpush1.msra.mxu0 0.0
        %472 = vmatprep.subr.mxu0 0.0
        %473 = vmatpush1.msra.mxu0 0.0
        %474 = vmatprep.subr.mxu0 0.0
        %475 = vmatpush1.msra.mxu0 0.0
        %476 = vmatprep.subr.mxu0 0.0
        %477 = vmatpush1.msra.mxu0 0.0
        %478 = vmatprep.subr.mxu0 0.0
        %479 = vmatpush1.msra.mxu0 0.0
        %480 = vmatprep.subr.mxu0 0.0
        %481 = vmatpush1.msra.mxu0 0.0
        %482 = vmatprep.subr.mxu0 0.0
        %483 = vmatpush1.msra.mxu0 0.0
        %484 = vmatprep.subr.mxu0 0.0
        %485 = vmatpush1.msra.mxu0 0.0
        %486 = vmatprep.subr.mxu0 0.0
        %487 = vmatpush1.msra.mxu0 0.0
        %488 = vmatprep.subr.mxu0 0.0
        %489 = vmatpush1.msra.mxu0 0.0
        %490 = vmatprep.subr.mxu0 0.0
        %491 = vmatpush1.msra.mxu0 %v454
        %492 = vmatprep.subr.mxu0 0.0
        %493 = vmatpush1.msra.mxu0 %v456
        %494 = vmatprep.subr.mxu0 0.0
        %495 = vmatpush1.msra.mxu0 %v455
        %496 = vmatprep.subr.mxu0 0.0
        %497 = vmatpush2.msra.mxu0 0.0
        %498 = vmatprep.subr.mxu0 0.0
        %499 = vmatpush2.msra.mxu0 0.0
        %500 = vmatprep.subr.mxu0 0.0
        %501 = vmatpush2.msra.mxu0 0.0
        %502 = vmatprep.subr.mxu0 0.0
        %503 = vmatpush2.msra.mxu0 0.0
        %504 = vmatprep.subr.mxu0 0.0
        %505 = vmatpush2.msra.mxu0 0.0
        %506 = vmatprep.subr.mxu0 0.0
        %507 = vmatpush2.msra.mxu0 0.0
        %508 = vmatprep.subr.mxu0 0.0
        %509 = vmatpush2.msra.mxu0 0.0
        %510 = vmatprep.subr.mxu0 0.0
        %511 = vmatpush2.msra.mxu0 0.0
        %512 = vmatprep.subr.mxu0 0.0
        %513 = vmatpush2.msra.mxu0 0.0
        %514 = vmatprep.subr.mxu0 0.0
        %515 = vmatpush2.msra.mxu0 0.0
        %516 = vmatprep.subr.mxu0 0.0
        %517 = vmatpush2.msra.mxu0 0.0
        %518 = vmatprep.subr.mxu0 0.0
        %519 = vmatpush2.msra.mxu0 0.0
        %520 = vmatprep.subr.mxu0 0.0
        %521 = vmatpush2.msra.mxu0 0.0
        %522 = vmatprep.subr.mxu0 0.0
        %523 = vmatpush2.msra.mxu0 0.0
        %524 = vmatprep.subr.mxu0 0.0
        %525 = vmatpush2.msra.mxu0 0.0
        %526 = vmatprep.subr.mxu0 0.0
        %527 = vmatpush2.msra.mxu0 0.0
        %528 = vmatprep.mubr.f32.mxu0 0.0
        %529 = vmatmul.mubr.f32.gmra.mxu0 %v462
        %v530 = vpop.f32.mrf.mxu0
        %v531 = vadd.f32 %v443, %v530
        %v532 = vpop.f32.mrf.mxu0
        %533 = vdwg.mxu0
        %v534 = vmax.f32 %v531, 0.0
        %v535 = vld [vmem:[%s5] sm:$0xff]
        %v536 = vld [vmem:[%s6] sm:$0xff]
        %538 = vset.pattern.permute.xlu0 0
        %539 = vperm.xlu0 %538, %v536
        %v540 = vpop.permute.xlu0 %539
        %v543 = vsel %vm344, %v535, 0
        %v545 = vsel %vm326, %v307, 0
        %547 = vmatprep.subr.mxu0 0.0
        %548 = vmatpush1.msra.mxu0 0.0
        %549 = vmatprep.subr.mxu0 0.0
        %550 = vmatpush1.msra.mxu0 0.0
        %551 = vmatprep.subr.mxu0 0.0
        %552 = vmatpush1.msra.mxu0 0.0
        %553 = vmatprep.subr.mxu0 0.0
        %554 = vmatpush1.msra.mxu0 0.0
        %555 = vmatprep.subr.mxu0 0.0
        %556 = vmatpush1.msra.mxu0 0.0
        %557 = vmatprep.subr.mxu0 0.0
        %558 = vmatpush1.msra.mxu0 0.0
        %559 = vmatprep.subr.mxu0 0.0
        %560 = vmatpush1.msra.mxu0 0.0
        %561 = vmatprep.subr.mxu0 0.0
        %562 = vmatpush1.msra.mxu0 0.0
        %563 = vmatprep.subr.mxu0 0.0
        %564 = vmatpush1.msra.mxu0 0.0
        %565 = vmatprep.subr.mxu0 0.0
        %566 = vmatpush1.msra.mxu0 0.0
        %567 = vmatprep.subr.mxu0 0.0
        %568 = vmatpush1.msra.mxu0 0.0
        %569 = vmatprep.subr.mxu0 0.0
        %570 = vmatpush1.msra.mxu0 0.0
        %571 = vmatprep.subr.mxu0 0.0
        %572 = vmatpush1.msra.mxu0 0.0
        %573 = vmatprep.subr.mxu0 0.0
        %574 = vmatpush1.msra.mxu0 0.0
        %575 = vmatprep.subr.mxu0 0.0
        %576 = vmatpush1.msra.mxu0 0.0
        %577 = vmatprep.subr.mxu0 0.0
        %578 = vmatpush1.msra.mxu0 %v545
        %579 = vmatprep.subr.mxu0 0.0
        %580 = vmatpush2.msra.mxu0 0.0
        %581 = vmatprep.subr.mxu0 0.0
        %582 = vmatpush2.msra.mxu0 0.0
        %583 = vmatprep.subr.mxu0 0.0
        %584 = vmatpush2.msra.mxu0 0.0
        %585 = vmatprep.subr.mxu0 0.0
        %586 = vmatpush2.msra.mxu0 0.0
        %587 = vmatprep.subr.mxu0 0.0
        %588 = vmatpush2.msra.mxu0 0.0
        %589 = vmatprep.subr.mxu0 0.0
        %590 = vmatpush2.msra.mxu0 0.0
        %591 = vmatprep.subr.mxu0 0.0
        %592 = vmatpush2.msra.mxu0 0.0
        %593 = vmatprep.subr.mxu0 0.0
        %594 = vmatpush2.msra.mxu0 0.0
        %595 = vmatprep.subr.mxu0 0.0
        %596 = vmatpush2.msra.mxu0 0.0
        %597 = vmatprep.subr.mxu0 0.0
        %598 = vmatpush2.msra.mxu0 0.0
        %599 = vmatprep.subr.mxu0 0.0
        %600 = vmatpush2.msra.mxu0 0.0
        %601 = vmatprep.subr.mxu0 0.0
        %602 = vmatpush2.msra.mxu0 0.0
        %603 = vmatprep.subr.mxu0 0.0
        %604 = vmatpush2.msra.mxu0 0.0
        %605 = vmatprep.subr.mxu0 0.0
        %606 = vmatpush2.msra.mxu0 0.0
        %607 = vmatprep.subr.mxu0 0.0
        %608 = vmatpush2.msra.mxu0 0.0
        %609 = vmatprep.subr.mxu0 0.0
        %610 = vmatpush2.msra.mxu0 0.0
        %611 = vmatprep.mubr.f32.mxu0 0.0
        %612 = vmatmul.mubr.f32.gmra.mxu0 %v543
        %v613 = vpop.f32.mrf.mxu0
        %v614 = vadd.f32 %v540, %v613
        %v615 = vpop.f32.mrf.mxu0
        %616 = vdwg.mxu0
        %v617 = vadd.f32 %v534, %v614
        %v618 = vmax.f32 %v617, 0.0
        %619 = vst.msk [vmem:[%s291] sm:$0xff] %vm424, %v618
        %s620 = sand.u32 %s197, 1
        %s621 = scalar_lea.sflag [#allocation5], %s620
        %s622 = sand.u32 %s197, 1
        %s623 = smul.addr %s622, 8
        %s624 = scalar_lea.vmem [#allocation4], %s623
        // Predicated region
        $region53: #{tpu_custom_call.1} parent=47 // pred_check
          %p625 = pneg %p207
        $region54: #{tpu_custom_call.1} parent=47 // pred_check_branch
          %627 = sbr.rel (%p625) target = $region56
        $region55: #{tpu_custom_call.1} parent=47 // pred_region
          %s629 = ssub.s32 128, 128
          %630 = vsyncadd %s621, %s629
          %s631 = sadd.s32 %s26, %s25
          %s632 = smul.addr %s631, 128
          %s633 = scalar_lea.hbm %s7, %s632
          %s635 = sshll.u32 %s624, 4
          %s636 = int_to_ptr.vmem [resolvable:$true] %s635
          %638 = dma.vmem_to_hbm [thread:$0]  %s636, 128, %s633, %s621
        $region56: #{tpu_custom_call.1} parent=47 // pred_fallthru
          _
      $region48: #{tpu_custom_call.1} parent=5 // pred_fallthru
        _
      %p639 = scmp.le.s32.totalorder 2, %s16
      // Predicated region
      $region57: #{tpu_custom_call.1} parent=5 // pred_check
        %p640 = pneg %p639
      $region58: #{tpu_custom_call.1} parent=5 // pred_check_branch
        %642 = sbr.rel (%p640) target = $region60
      $region59: #{tpu_custom_call.1} parent=5 // pred_region
        %s643 = ssub.s32 %s16, 2
        // Predicated region
        $region61: #{tpu_custom_call.1} parent=59 // pred_check
          %p644 = pneg %p213
        $region62: #{tpu_custom_call.1} parent=59 // pred_check_branch
          %646 = sbr.rel (%p644) target = $region64
        $region63: #{tpu_custom_call.1} parent=59 // pred_region
          %s647 = sand.u32 %s198, 1
          %s648 = scalar_lea.sflag [#allocation5], %s647
          %s649 = sand.u32 %s198, 1
          %s650 = smul.addr %s649, 8
          %s651 = scalar_lea.vmem [#allocation4], %s650
          %652 = dma.done %s648, 128
        $region64: #{tpu_custom_call.1} parent=59 // pred_fallthru
          _
      $region60: #{tpu_custom_call.1} parent=5 // pred_fallthru
        _
    $region6: #{tpu_custom_call.1} parent=1 // loop_footer
      %s20 = sadd.s32 1, %s16
    $region7: #{tpu_custom_call.1} parent=1 // loop_footer_branch
      %15 = sbr.rel target = $region3
    $region8: #{tpu_custom_call.1} parent=1 // loop_exit
      _
    %653 = vsyncpa [#allocation5], 1
    %s654 = scalar_lea.sflag [#allocation5], 1
    %655 = vsyncpa %s654, 1

</llo_original>
